<compile_context>
chip_gen: v7x
topology: tpu7x:2x2x1
jax: 0.10.0
libtpu: 0.0.40
codegen_flags: <defaults>
</compile_context>

<pallas_src>
import numpy as np

import jax
import jax.numpy as jnp
from jax.experimental import pallas as pl
from jax.experimental.pallas import tpu as pltpu


def _round_up(x, m):
    return (x + m - 1) // m * m


def _vmem_limit_bytes(est_bytes):
    # 2x headroom over the estimated tile footprint, floor 16 MiB, and cap at
    # 48 MiB so we never request v7x's entire 64 MiB physical VMEM.
    return int(min(48 << 20, max(16 << 20, 2 * int(est_bytes))))


# --------------------------- index-map helpers --------------------------------
# When block_sparse, the index maps also receive the scalar-prefetch refs
# (rmap_k, nnz) positionally after the grid indices.

def _adj_map(nk, block_sparse):
    if block_sparse:
        return lambda i, k, rmk, nz: (i, rmk[i * nk + k])
    return lambda i, k: (i, k)


def _xk_map(nk, block_sparse):
    if block_sparse:
        return lambda i, k, rmk, nz: (rmk[i * nk + k], 0)
    return lambda i, k: (k, 0)


def _row_map(block_sparse):
    if block_sparse:
        return lambda i, k, rmk, nz: (i, 0)
    return lambda i, k: (i, 0)


def _const_map(block_sparse):
    if block_sparse:
        return lambda i, k, rmk, nz: (0, 0)
    return lambda i, k: (0, 0)


# --------------------------- adjacency preprocessing --------------------------

def preprocess_adj(adj, *, tm=512, tk=1024, compute_dtype=jnp.bfloat16,
                   empty_block_threshold=0.05):
    """One-time (cached) preprocessing of a static adjacency matrix.

    Returns a dict holding the compute-dtype adjacency plus (optionally)
    flattened block-sparsity tables for the Pallas kernels.
    """
    N = adj.shape[0]
    assert adj.shape == (N, N)
    tm = min(tm, N)
    tk = min(tk, N)
    # Keep >= 2 row tiles so the "parallel" i axis can shard across v7x's 2 TCs.
    if tm == N and N % 2 == 0 and (N // 2) % 16 == 0:
        tm = N // 2
    assert N % tm == 0 and N % tk == 0
    assert tm % 16 == 0 or tm == N          # bf16 min tile is (16, 128)
    assert tk % 128 == 0 or tk == N
    ni, nk = N // tm, N // tk

    adj_c = jnp.asarray(adj, dtype=compute_dtype)       # cast cached here, once

    nnz2d = (adj_c != 0).reshape(ni, tm, nk, tk).any(axis=(1, 3))
    nnz_host = np.asarray(jax.device_get(nnz2d))
    empty_frac = 1.0 - float(nnz_host.mean())
    block_sparse = (empty_frac >= empty_block_threshold) and (ni * nk > 1)

    pre = dict(adj=adj_c, tm=tm, tk=tk, ni=ni, nk=nk,
               block_sparse=block_sparse, rmap_k=None, nnz=None,
               empty_block_fraction=empty_frac)
    if block_sparse:
        nnz_i = nnz_host.astype(np.int32)
        rmap_k = np.zeros((ni, nk), np.int32)
        for i in range(ni):                 # remap stays within row i
            last = 0
            for k in range(nk):
                if nnz_i[i, k]:
                    last = k
                rmap_k[i, k] = last
        pre["rmap_k"] = jnp.asarray(rmap_k.reshape(-1), jnp.int32)
        pre["nnz"] = jnp.asarray(nnz_i.reshape(-1), jnp.int32)
    return pre


# ------------------------------- kernels --------------------------------------

def _make_layer1_kernel(nk, block_sparse):
    """Layer 1 fused: aggregate(adj1 @ x) -> transform -> ReLU -> layer-2 projections.

    Outputs (written once, at the last K step, per row tile):
      on = ReLU(h) @ W2_neigh                 (bf16)
      os = ReLU(h) @ W2_self + b2             (f32)
    so layer 2 becomes a pure aggregation kernel and h never hits HBM.
    """
    def kernel(*args):
        if block_sparse:
            (rmk_ref, nnz_ref, adj_ref, xk_ref, xi_ref,
             w1n_ref, w1s_ref, b1_ref, w2n_ref, w2s_ref, b2_ref,
             on_ref, os_ref, acc_ref) = args
        else:
            nnz_ref = None
            (adj_ref, xk_ref, xi_ref,
             w1n_ref, w1s_ref, b1_ref, w2n_ref, w2s_ref, b2_ref,
             on_ref, os_ref, acc_ref) = args

        i = pl.program_id(0)
        k = pl.program_id(1)

        @pl.when(k == 0)
        def _init():
            acc_ref[...] = jnp.zeros_like(acc_ref)

        def _accumulate():
            acc_ref[...] += jnp.dot(adj_ref[...], xk_ref[...],
                                    preferred_element_type=jnp.float32)

        if block_sparse:
            pl.when(nnz_ref[i * nk + k] != 0)(_accumulate)
        else:
            _accumulate()

        @pl.when(k == pl.num_programs(1) - 1)
        def _finalize():
            h = jnp.dot(acc_ref[...].astype(w1n_ref.dtype), w1n_ref[...],
                        preferred_element_type=jnp.float32)
            h = h + jnp.dot(xi_ref[...], w1s_ref[...],
                            preferred_element_type=jnp.float32)
            h = h + b1_ref[...]
            h = jnp.maximum(h, 0.0)                 # ReLU between SAGE layers
            # TODO(synk): F.dropout(p=0.5) skipped -- inference (training=False).
            h_c = h.astype(w2n_ref.dtype)
            on_ref[...] = jnp.dot(h_c, w2n_ref[...],
                                  preferred_element_type=jnp.float32
                                  ).astype(on_ref.dtype)
            os_ref[...] = (jnp.dot(h_c, w2s_ref[...],
                                   preferred_element_type=jnp.float32)
                           + b2_ref[...]).astype(os_ref.dtype)
    return kernel


def _make_layer2_kernel(nk, block_sparse, cout_valid, cout_padded):
    """Layer 2: pure aggregation of pre-projected features + masked log-softmax.

    out = log_softmax( adj2 @ (h @ W2n)  +  (h @ W2s + b2) )
    """
    def kernel(*args):
        if block_sparse:
            (rmk_ref, nnz_ref, adj_ref, pk_ref, base_ref, o_ref, acc_ref) = args
        else:
            nnz_ref = None
            (adj_ref, pk_ref, base_ref, o_ref, acc_ref) = args

        i = pl.program_id(0)
        k = pl.program_id(1)

        @pl.when(k == 0)
        def _init():
            acc_ref[...] = jnp.zeros_like(acc_ref)

        def _accumulate():
            acc_ref[...] += jnp.dot(adj_ref[...], pk_ref[...],
                                    preferred_element_type=jnp.float32)

        if block_sparse:
            pl.when(nnz_ref[i * nk + k] != 0)(_accumulate)
        else:
            _accumulate()

        @pl.when(k == pl.num_programs(1) - 1)
        def _finalize():
            out = acc_ref[...] + base_ref[...]
            if cout_valid < cout_padded:
                col = jax.lax.broadcasted_iota(jnp.int32, out.shape, 1)
                out = jnp.where(col < cout_valid, out, -1e30)
            m = jnp.max(out, axis=-1, keepdims=True)
            s = out - m
            lse = jnp.log(jnp.sum(jnp.exp(s), axis=-1, keepdims=True))
            o_ref[...] = (s - lse).astype(o_ref.dtype)
    return kernel


# ------------------------------ forward wrapper --------------------------------

def sage_forward(x, adj1_pre, adj2_pre, params, *, compute_dtype=jnp.bfloat16):
    """Full SAGE.forward (2 layers) using cached preprocessed adjacencies."""
    N, Cin = x.shape
    Chid = params["w1_neigh"].shape[1]
    Cout = params["w2_neigh"].shape[1]
    assert adj1_pre["adj"].shape == (N, N)
    assert adj2_pre["adj"].shape == (N, N)

    Cin_p = _round_up(Cin, 128)
    Chid_p = _round_up(Chid, 128)
    Cout_p = _round_up(Cout, 128)

    def pad_cols(a, cp):
        return a if a.shape[1] == cp else jnp.pad(a, ((0, 0), (0, cp - a.shape[1])))

    def pad_rows(a, rp):
        return a if a.shape[0] == rp else jnp.pad(a, ((0, rp - a.shape[0]), (0, 0)))

    # Lane-dense padding: features and weights padded to 128-multiples (zeros,
    # so the math is unchanged); per-forward cost is O(N*C), not O(N^2).
    x_c = pad_cols(x, Cin_p).astype(compute_dtype)
    w1n = pad_cols(pad_rows(params["w1_neigh"], Cin_p), Chid_p).astype(compute_dtype)
    w1s = pad_cols(pad_rows(params["w1_self"], Cin_p), Chid_p).astype(compute_dtype)
    b1 = pad_cols(params["b1"], Chid_p).astype(jnp.float32)
    w2n = pad_cols(pad_rows(params["w2_neigh"], Chid_p), Cout_p).astype(compute_dtype)
    w2s = pad_cols(pad_rows(params["w2_self"], Chid_p), Cout_p).astype(compute_dtype)
    b2 = pad_cols(params["b2"], Cout_p).astype(jnp.float32)

    # ---------------- layer 1 (fused) ----------------
    tm1, tk1 = adj1_pre["tm"], adj1_pre["tk"]
    ni1, nk1 = adj1_pre["ni"], adj1_pre["nk"]
    bs1 = adj1_pre["block_sparse"]

    in_specs1 = [
        pl.BlockSpec((tm1, tk1), _adj_map(nk1, bs1)),       # adjacency block
        pl.BlockSpec((tk1, Cin_p), _xk_map(nk1, bs1)),      # neighbour features (K block)
        pl.BlockSpec((tm1, Cin_p), _row_map(bs1)),          # self features (row tile)
        pl.BlockSpec((Cin_p, Chid_p), _const_map(bs1)),     # W1_neigh (resident)
        pl.BlockSpec((Cin_p, Chid_p), _const_map(bs1)),     # W1_self
        pl.BlockSpec((1, Chid_p), _const_map(bs1)),         # b1
        pl.BlockSpec((Chid_p, Cout_p), _const_map(bs1)),    # W2_neigh (fused proj)
        pl.BlockSpec((Chid_p, Cout_p), _const_map(bs1)),    # W2_self
        pl.BlockSpec((1, Cout_p), _const_map(bs1)),         # b2
    ]
    out_specs1 = [
        pl.BlockSpec((tm1, Cout_p), _row_map(bs1)),         # h @ W2_neigh   (bf16)
        pl.BlockSpec((tm1, Cout_p), _row_map(bs1)),         # h @ W2_self+b2 (f32)
    ]
    est1 = (2 * tm1 * tk1 * 2 + 2 * tk1 * Cin_p * 2 + 2 * tm1 * Cin_p * 2
            + 4 * Cin_p * Chid_p * 2 + 4 * Chid_p * Cout_p * 2
            + 2 * (Chid_p + Cout_p) * 4
            + 2 * tm1 * Cout_p * (2 + 4)
            + tm1 * Cin_p * 4)
    grid_spec1 = pltpu.PrefetchScalarGridSpec(
        num_scalar_prefetch=2 if bs1 else 0,
        grid=(ni1, nk1),
        in_specs=in_specs1,
        out_specs=out_specs1,
        scratch_shapes=[pltpu.VMEM((tm1, Cin_p), jnp.float32)],
    )
    args1 = (adj1_pre["adj"], x_c, x_c, w1n, w1s, b1, w2n, w2s, b2)
    if bs1:
        args1 = (adj1_pre["rmap_k"], adj1_pre["nnz"]) + args1

    pn, ps = pl.pallas_call(
        _make_layer1_kernel(nk1, bs1),
        out_shape=(jax.ShapeDtypeStruct((N, Cout_p), compute_dtype),
                   jax.ShapeDtypeStruct((N, Cout_p), jnp.float32)),
        grid_spec=grid_spec1,
        compiler_params=pltpu.CompilerParams(
            dimension_semantics=("parallel", "arbitrary"),
            vmem_limit_bytes=_vmem_limit_bytes(est1)),
    )(*args1)

    # ---------------- layer 2 (pure aggregation + log-softmax) ----------------
    tm2, tk2 = adj2_pre["tm"], adj2_pre["tk"]
    ni2, nk2 = adj2_pre["ni"], adj2_pre["nk"]
    bs2 = adj2_pre["block_sparse"]

    in_specs2 = [
        pl.BlockSpec((tm2, tk2), _adj_map(nk2, bs2)),       # adjacency block
        pl.BlockSpec((tk2, Cout_p), _xk_map(nk2, bs2)),     # pre-projected neigh feats
        pl.BlockSpec((tm2, Cout_p), _row_map(bs2)),         # self contribution + bias
    ]
    out_specs2 = pl.BlockSpec((tm2, Cout_p), _row_map(bs2))
    est2 = (2 * tm2 * tk2 * 2 + 2 * tk2 * Cout_p * 2
            + 2 * tm2 * Cout_p * 4 + 2 * tm2 * Cout_p * 4
            + tm2 * Cout_p * 4)
    grid_spec2 = pltpu.PrefetchScalarGridSpec(
        num_scalar_prefetch=2 if bs2 else 0,
        grid=(ni2, nk2),
        in_specs=in_specs2,
        out_specs=out_specs2,
        scratch_shapes=[pltpu.VMEM((tm2, Cout_p), jnp.float32)],
    )
    args2 = (adj2_pre["adj"], pn, ps)
    if bs2:
        args2 = (adj2_pre["rmap_k"], adj2_pre["nnz"]) + args2

    z = pl.pallas_call(
        _make_layer2_kernel(nk2, bs2, Cout, Cout_p),
        out_shape=jax.ShapeDtypeStruct((N, Cout_p), jnp.float32),
        grid_spec=grid_spec2,
        compiler_params=pltpu.CompilerParams(
            dimension_semantics=("parallel", "arbitrary"),
            vmem_limit_bytes=_vmem_limit_bytes(est2)),
    )(*args2)

    return z[:, :Cout] if Cout_p != Cout else z


# ------------------------------- references -----------------------------------

def _matched_reference(x, adj1, adj2, p):
    """Reference mirroring the kernels' bf16-stream / f32-accumulate policy."""
    bf, f32 = jnp.bfloat16, jnp.float32
    adj1_b, adj2_b = adj1.astype(bf), adj2.astype(bf)
    x_b = x.astype(bf)
    w1n_b, w1s_b = p["w1_neigh"].astype(bf), p["w1_self"].astype(bf)
    w2n_b, w2s_b = p["w2_neigh"].astype(bf), p["w2_self"].astype(bf)

    agg = jnp.dot(adj1_b, x_b, preferred_element_type=f32).astype(bf)
    h = (jnp.dot(agg, w1n_b, preferred_element_type=f32)
         + jnp.dot(x_b, w1s_b, preferred_element_type=f32) + p["b1"])
    h = jnp.maximum(h, 0.0).astype(bf)

    pn = jnp.dot(h, w2n_b, preferred_element_type=f32).astype(bf)
    ps = jnp.dot(h, w2s_b, preferred_element_type=f32) + p["b2"]
    z = jnp.dot(adj2_b, pn, preferred_element_type=f32) + ps
    return jax.nn.log_softmax(z, axis=-1)


def _f32_reference(x, adj1, adj2, p):
    h = adj1 @ x @ p["w1_neigh"] + x @ p["w1_self"] + p["b1"]
    h = jnp.maximum(h, 0.0)
    z = adj2 @ h @ p["w2_neigh"] + h @ p["w2_self"] + p["b2"]
    return jax.nn.log_softmax(z, axis=-1)


# --------------------------------- demo ----------------------------------------

if __name__ == "__main__":
    # Small deterministic problem: N nodes, in=64, hidden=256, out=16 classes.
    N, C_IN, C_HID, C_OUT = 256, 64, 256, 16
    TM, TK = 128, 128      # ni = nk = 2 -> >= 2 row tiles (keeps both v7x TCs busy)

    key = jax.random.PRNGKey(0)
    kx, ka1, ka2, k1, k2, k3, k4 = jax.random.split(key, 7)

    x = jax.random.normal(kx, (N, C_IN), dtype=jnp.float32)

    # Synthetic sampled adjacencies: sparse binary, self loops removed
    # ((adj - id) in the PyTorch code) and transposed (sampled_adj = (...).t()).
    eye = jnp.eye(N, dtype=jnp.float32)
    group = jnp.arange(N) // (N // 2)
    block_mask = (group[:, None] == group[None, :]).astype(jnp.float32)

    def make_adj(k, structured):
        a = (jax.random.uniform(k, (N, N)) < 0.05).astype(jnp.float32)
        if structured:
            a = a * block_mask          # GCoD-style 2-group block partition
        a = a * (1.0 - eye)
        return a.T

    adj1 = make_adj(ka1, structured=True)    # block-diagonal -> block-sparse path
    adj2 = make_adj(ka2, structured=False)   # unstructured   -> dense path

    def init_w(k, fan_in, fan_out):
        return (jax.random.normal(k, (fan_in, fan_out), dtype=jnp.float32)
                / jnp.sqrt(jnp.float32(fan_in)))

    params = {
        "w1_neigh": init_w(k1, C_IN, C_HID),
        "w1_self": init_w(k2, C_IN, C_HID),
        "b1": jnp.zeros((1, C_HID), jnp.float32),
        "w2_neigh": init_w(k3, C_HID, C_OUT),
        "w2_self": init_w(k4, C_HID, C_OUT),
        "b2": jnp.zeros((1, C_OUT), jnp.float32),
    }

    # One-time cached preprocessing (like the PyTorch module's __init__):
    # bf16 adjacency copy + block-sparsity tables, amortized over all forwards.
    adj1_pre = preprocess_adj(adj1, tm=TM, tk=TK)
    adj2_pre = preprocess_adj(adj2, tm=TM, tk=TK)
    assert adj1_pre["block_sparse"]          # block-diagonal -> gate enabled
    assert not adj2_pre["block_sparse"]      # unstructured   -> gate disabled

    out = jax.block_until_ready(sage_forward(x, adj1_pre, adj2_pre, params))
    assert out.shape == (N, C_OUT)
    assert out.dtype == jnp.float32

    ref_matched = _matched_reference(x, adj1, adj2, params)
    err = float(jnp.max(jnp.abs(out - ref_matched)))
    assert err < 5e-2, f"mismatch vs precision-matched reference: {err}"

    ref_f32 = _f32_reference(x, adj1, adj2, params)
    err32 = float(jnp.max(jnp.abs(out - ref_f32)))
    assert err32 < 1.0, f"gross mismatch vs f32 reference: {err32}"

    print("KERNEL_OK")
</pallas_src>

<mosaic_0001>
module attributes {stable_mosaic.version = 11 : i64} {
  func.func @kernel(%arg0: i32, %arg1: i32, %arg2: memref<4xi32, #tpu.memory_space<smem>>, %arg3: memref<4xi32, #tpu.memory_space<smem>>, %arg4: memref<128x128xbf16, #tpu.memory_space<vmem>>, %arg5: memref<128x128xbf16, #tpu.memory_space<vmem>>, %arg6: memref<128x128xbf16, #tpu.memory_space<vmem>>, %arg7: memref<128x256xbf16, #tpu.memory_space<vmem>>, %arg8: memref<128x256xbf16, #tpu.memory_space<vmem>>, %arg9: memref<1x256xf32, #tpu.memory_space<vmem>>, %arg10: memref<256x128xbf16, #tpu.memory_space<vmem>>, %arg11: memref<256x128xbf16, #tpu.memory_space<vmem>>, %arg12: memref<1x128xf32, #tpu.memory_space<vmem>>, %arg13: memref<128x128xbf16, #tpu.memory_space<vmem>>, %arg14: memref<128x128xf32, #tpu.memory_space<vmem>>, %arg15: memref<128x128xf32, #tpu.memory_space<vmem>>) attributes {dimension_semantics = [#tpu.dimension_semantics<parallel>, #tpu.dimension_semantics<arbitrary>], iteration_bounds = array<i64: 2, 2>, scalar_prefetch = 2 : i64, scratch_operands = 1 : i64, tpu.core_type = #tpu.core_type<tc>, window_params = [{transform_indices = @transform_0, window_bounds = array<i64: 128, 128>}, {transform_indices = @transform_1, window_bounds = array<i64: 128, 128>}, {transform_indices = @transform_2, window_bounds = array<i64: 128, 128>}, {pipeline_mode = #tpu.pipeline_mode<synchronous>, transform_indices = @transform_3, window_bounds = array<i64: 128, 256>}, {pipeline_mode = #tpu.pipeline_mode<synchronous>, transform_indices = @transform_4, window_bounds = array<i64: 128, 256>}, {pipeline_mode = #tpu.pipeline_mode<synchronous>, transform_indices = @transform_5, window_bounds = array<i64: 1, 256>}, {pipeline_mode = #tpu.pipeline_mode<synchronous>, transform_indices = @transform_6, window_bounds = array<i64: 256, 128>}, {pipeline_mode = #tpu.pipeline_mode<synchronous>, transform_indices = @transform_7, window_bounds = array<i64: 256, 128>}, {pipeline_mode = #tpu.pipeline_mode<synchronous>, transform_indices = @transform_8, window_bounds = array<i64: 1, 128>}, {transform_indices = @transform_9, window_bounds = array<i64: 128, 128>}, {transform_indices = @transform_10, window_bounds = array<i64: 128, 128>}]} {
    %c0_i32 = arith.constant 0 : i32
    %0 = arith.cmpi eq, %arg1, %c0_i32 : i32
    %1 = arith.extui %0 : i1 to i32
    %c0_i32_0 = arith.constant 0 : i32
    %2 = arith.cmpi ne, %1, %c0_i32_0 : i32
    scf.if %2 {
      %cst = arith.constant 0.000000e+00 : f32
      %13 = vector.broadcast %cst : f32 to vector<128x128xf32>
      %c0 = arith.constant 0 : index
      %c0_4 = arith.constant 0 : index
      %14 = vector.load %arg15[%c0, %c0_4] : memref<128x128xf32, #tpu.memory_space<vmem>>, vector<128x128xf32>
      tpu.vector_store %arg15[%c0, %c0_4], %13 {strides = array<i32>} : memref<128x128xf32, #tpu.memory_space<vmem>>, vector<128x128xf32>,
    } else {
    }
    %c2_i32 = arith.constant 2 : i32
    %3 = arith.muli %arg0, %c2_i32 : i32
    %4 = arith.addi %3, %arg1 : i32
    %5 = arith.index_cast %4 : i32 to index
    %6 = memref.load %arg3[%5] : memref<4xi32, #tpu.memory_space<smem>>
    %c0_i32_1 = arith.constant 0 : i32
    %7 = arith.cmpi ne, %6, %c0_i32_1 : i32
    %8 = arith.extui %7 : i1 to i32
    %c0_i32_2 = arith.constant 0 : i32
    %9 = arith.cmpi ne, %8, %c0_i32_2 : i32
    scf.if %9 {
      %c0 = arith.constant 0 : index
      %c0_4 = arith.constant 0 : index
      %13 = vector.load %arg15[%c0, %c0_4] : memref<128x128xf32, #tpu.memory_space<vmem>>, vector<128x128xf32>
      %c0_5 = arith.constant 0 : index
      %c0_6 = arith.constant 0 : index
      %14 = vector.load %arg4[%c0_5, %c0_6] : memref<128x128xbf16, #tpu.memory_space<vmem>>, vector<128x128xbf16>
      %c0_7 = arith.constant 0 : index
      %c0_8 = arith.constant 0 : index
      %15 = vector.load %arg5[%c0_7, %c0_8] : memref<128x128xbf16, #tpu.memory_space<vmem>>, vector<128x128xbf16>
      %cst = arith.constant dense<0.000000e+00> : vector<128x128xf32>
      %16 = tpu.matmul %14, %15, %cst {dimension_numbers = #tpu.dot_dimension_numbers<[1], [0], [0], [1], [0, 0, 1, 1], [], []>} : vector<128x128xbf16>, vector<128x128xbf16>, vector<128x128xf32> -> vector<128x128xf32>
      %17 = arith.addf %13, %16 : vector<128x128xf32>
      %c0_9 = arith.constant 0 : index
      %c0_10 = arith.constant 0 : index
      %18 = vector.load %arg15[%c0_9, %c0_10] : memref<128x128xf32, #tpu.memory_space<vmem>>, vector<128x128xf32>
      tpu.vector_store %arg15[%c0_9, %c0_10], %17 {strides = array<i32>} : memref<128x128xf32, #tpu.memory_space<vmem>>, vector<128x128xf32>,
    } else {
    }
    %c1_i32 = arith.constant 1 : i32
    %10 = arith.cmpi eq, %arg1, %c1_i32 : i32
    %11 = arith.extui %10 : i1 to i32
    %c0_i32_3 = arith.constant 0 : i32
    %12 = arith.cmpi ne, %11, %c0_i32_3 : i32
    scf.if %12 {
      %c0 = arith.constant 0 : index
      %c0_4 = arith.constant 0 : index
      %13 = vector.load %arg15[%c0, %c0_4] : memref<128x128xf32, #tpu.memory_space<vmem>>, vector<128x128xf32>
      %14 = arith.truncf %13 : vector<128x128xf32> to vector<128x128xbf16>
      %c0_5 = arith.constant 0 : index
      %c0_6 = arith.constant 0 : index
      %15 = vector.load %arg7[%c0_5, %c0_6] : memref<128x256xbf16, #tpu.memory_space<vmem>>, vector<128x256xbf16>
      %cst = arith.constant dense<0.000000e+00> : vector<128x256xf32>
      %16 = tpu.matmul %14, %15, %cst {dimension_numbers = #tpu.dot_dimension_numbers<[1], [0], [0], [1], [0, 0, 1, 1], [], []>} : vector<128x128xbf16>, vector<128x256xbf16>, vector<128x256xf32> -> vector<128x256xf32>
      %c0_7 = arith.constant 0 : index
      %c0_8 = arith.constant 0 : index
      %17 = vector.load %arg6[%c0_7, %c0_8] : memref<128x128xbf16, #tpu.memory_space<vmem>>, vector<128x128xbf16>
      %c0_9 = arith.constant 0 : index
      %c0_10 = arith.constant 0 : index
      %18 = vector.load %arg8[%c0_9, %c0_10] : memref<128x256xbf16, #tpu.memory_space<vmem>>, vector<128x256xbf16>
      %cst_11 = arith.constant dense<0.000000e+00> : vector<128x256xf32>
      %19 = tpu.matmul %17, %18, %cst_11 {dimension_numbers = #tpu.dot_dimension_numbers<[1], [0], [0], [1], [0, 0, 1, 1], [], []>} : vector<128x128xbf16>, vector<128x256xbf16>, vector<128x256xf32> -> vector<128x256xf32>
      %20 = arith.addf %16, %19 : vector<128x256xf32>
      %c0_12 = arith.constant 0 : index
      %c0_13 = arith.constant 0 : index
      %21 = vector.load %arg9[%c0_12, %c0_13] : memref<1x256xf32, #tpu.memory_space<vmem>>, vector<1x256xf32>
      %22 = vector.broadcast %21 : vector<1x256xf32> to vector<128x256xf32>
      %23 = arith.addf %20, %22 : vector<128x256xf32>
      %cst_14 = arith.constant 0.000000e+00 : f32
      %24 = vector.broadcast %cst_14 : f32 to vector<128x256xf32>
      %25 = arith.maximumf %23, %24 : vector<128x256xf32>
      %26 = arith.truncf %25 : vector<128x256xf32> to vector<128x256xbf16>
      %c0_15 = arith.constant 0 : index
      %c0_16 = arith.constant 0 : index
      %27 = vector.load %arg10[%c0_15, %c0_16] : memref<256x128xbf16, #tpu.memory_space<vmem>>, vector<256x128xbf16>
      %cst_17 = arith.constant dense<0.000000e+00> : vector<128x128xf32>
      %28 = tpu.matmul %26, %27, %cst_17 {dimension_numbers = #tpu.dot_dimension_numbers<[1], [0], [0], [1], [0, 0, 1, 1], [], []>} : vector<128x256xbf16>, vector<256x128xbf16>, vector<128x128xf32> -> vector<128x128xf32>
      %29 = arith.truncf %28 : vector<128x128xf32> to vector<128x128xbf16>
      %c0_18 = arith.constant 0 : index
      %c0_19 = arith.constant 0 : index
      %30 = vector.load %arg13[%c0_18, %c0_19] : memref<128x128xbf16, #tpu.memory_space<vmem>>, vector<128x128xbf16>
      tpu.vector_store %arg13[%c0_18, %c0_19], %29 {strides = array<i32>} : memref<128x128xbf16, #tpu.memory_space<vmem>>, vector<128x128xbf16>,
      %c0_20 = arith.constant 0 : index
      %c0_21 = arith.constant 0 : index
      %31 = vector.load %arg11[%c0_20, %c0_21] : memref<256x128xbf16, #tpu.memory_space<vmem>>, vector<256x128xbf16>
      %cst_22 = arith.constant dense<0.000000e+00> : vector<128x128xf32>
      %32 = tpu.matmul %26, %31, %cst_22 {dimension_numbers = #tpu.dot_dimension_numbers<[1], [0], [0], [1], [0, 0, 1, 1], [], []>} : vector<128x256xbf16>, vector<256x128xbf16>, vector<128x128xf32> -> vector<128x128xf32>
      %c0_23 = arith.constant 0 : index
      %c0_24 = arith.constant 0 : index
      %33 = vector.load %arg12[%c0_23, %c0_24] : memref<1x128xf32, #tpu.memory_space<vmem>>, vector<1x128xf32>
      %34 = vector.broadcast %33 : vector<1x128xf32> to vector<128x128xf32>
      %35 = arith.addf %32, %34 : vector<128x128xf32>
      %c0_25 = arith.constant 0 : index
      %c0_26 = arith.constant 0 : index
      %36 = vector.load %arg14[%c0_25, %c0_26] : memref<128x128xf32, #tpu.memory_space<vmem>>, vector<128x128xf32>
      tpu.vector_store %arg14[%c0_25, %c0_26], %35 {strides = array<i32>} : memref<128x128xf32, #tpu.memory_space<vmem>>, vector<128x128xf32>,
    } else {
    }
    return
  }
  func.func @transform_0(%arg0: i32, %arg1: i32, %arg2: memref<4xi32, #tpu.memory_space<smem>>, %arg3: memref<4xi32, #tpu.memory_space<smem>>) -> (i32, i32) {
    %c2_i32 = arith.constant 2 : i32
    %0 = arith.muli %arg0, %c2_i32 : i32
    %1 = arith.addi %0, %arg1 : i32
    %2 = arith.index_cast %1 : i32 to index
    %3 = memref.load %arg2[%2] : memref<4xi32, #tpu.memory_space<smem>>
    %c0_i32 = arith.constant 0 : i32
    return %arg0, %3 : i32, i32
  }
  func.func @transform_1(%arg0: i32, %arg1: i32, %arg2: memref<4xi32, #tpu.memory_space<smem>>, %arg3: memref<4xi32, #tpu.memory_space<smem>>) -> (i32, i32) {
    %c2_i32 = arith.constant 2 : i32
    %0 = arith.muli %arg0, %c2_i32 : i32
    %1 = arith.addi %0, %arg1 : i32
    %2 = arith.index_cast %1 : i32 to index
    %3 = memref.load %arg2[%2] : memref<4xi32, #tpu.memory_space<smem>>
    %c0_i32 = arith.constant 0 : i32
    %c0_i32_0 = arith.constant 0 : i32
    return %3, %c0_i32 : i32, i32
  }
  func.func @transform_2(%arg0: i32, %arg1: i32, %arg2: memref<4xi32, #tpu.memory_space<smem>>, %arg3: memref<4xi32, #tpu.memory_space<smem>>) -> (i32, i32) {
    %c0_i32 = arith.constant 0 : i32
    %c0_i32_0 = arith.constant 0 : i32
    return %arg0, %c0_i32 : i32, i32
  }
  func.func @transform_3(%arg0: i32, %arg1: i32, %arg2: memref<4xi32, #tpu.memory_space<smem>>, %arg3: memref<4xi32, #tpu.memory_space<smem>>) -> (i32, i32) {
    %c0_i32 = arith.constant 0 : i32
    %c0_i32_0 = arith.constant 0 : i32
    %c0_i32_1 = arith.constant 0 : i32
    return %c0_i32, %c0_i32_0 : i32, i32
  }
  func.func @transform_4(%arg0: i32, %arg1: i32, %arg2: memref<4xi32, #tpu.memory_space<smem>>, %arg3: memref<4xi32, #tpu.memory_space<smem>>) -> (i32, i32) {
    %c0_i32 = arith.constant 0 : i32
    %c0_i32_0 = arith.constant 0 : i32
    %c0_i32_1 = arith.constant 0 : i32
    return %c0_i32, %c0_i32_0 : i32, i32
  }
  func.func @transform_5(%arg0: i32, %arg1: i32, %arg2: memref<4xi32, #tpu.memory_space<smem>>, %arg3: memref<4xi32, #tpu.memory_space<smem>>) -> (i32, i32) {
    %c0_i32 = arith.constant 0 : i32
    %c0_i32_0 = arith.constant 0 : i32
    %c0_i32_1 = arith.constant 0 : i32
    return %c0_i32, %c0_i32_0 : i32, i32
  }
  func.func @transform_6(%arg0: i32, %arg1: i32, %arg2: memref<4xi32, #tpu.memory_space<smem>>, %arg3: memref<4xi32, #tpu.memory_space<smem>>) -> (i32, i32) {
    %c0_i32 = arith.constant 0 : i32
    %c0_i32_0 = arith.constant 0 : i32
    %c0_i32_1 = arith.constant 0 : i32
    return %c0_i32, %c0_i32_0 : i32, i32
  }
  func.func @transform_7(%arg0: i32, %arg1: i32, %arg2: memref<4xi32, #tpu.memory_space<smem>>, %arg3: memref<4xi32, #tpu.memory_space<smem>>) -> (i32, i32) {
    %c0_i32 = arith.constant 0 : i32
    %c0_i32_0 = arith.constant 0 : i32
    %c0_i32_1 = arith.constant 0 : i32
    return %c0_i32, %c0_i32_0 : i32, i32
  }
  func.func @transform_8(%arg0: i32, %arg1: i32, %arg2: memref<4xi32, #tpu.memory_space<smem>>, %arg3: memref<4xi32, #tpu.memory_space<smem>>) -> (i32, i32) {
    %c0_i32 = arith.constant 0 : i32
    %c0_i32_0 = arith.constant 0 : i32
    %c0_i32_1 = arith.constant 0 : i32
    return %c0_i32, %c0_i32_0 : i32, i32
  }
  func.func @transform_9(%arg0: i32, %arg1: i32, %arg2: memref<4xi32, #tpu.memory_space<smem>>, %arg3: memref<4xi32, #tpu.memory_space<smem>>) -> (i32, i32) {
    %c0_i32 = arith.constant 0 : i32
    %c0_i32_0 = arith.constant 0 : i32
    return %arg0, %c0_i32 : i32, i32
  }
  func.func @transform_10(%arg0: i32, %arg1: i32, %arg2: memref<4xi32, #tpu.memory_space<smem>>, %arg3: memref<4xi32, #tpu.memory_space<smem>>) -> (i32, i32) {
    %c0_i32 = arith.constant 0 : i32
    %c0_i32_0 = arith.constant 0 : i32
    return %arg0, %c0_i32 : i32, i32
  }
}

</mosaic_0001>

<llo_original>
// kernel: tpu_custom_call.1
$region0: #{tpu_custom_call.1}
  #allocation0 [shape = 'u32[]', space=smem, size = 0x4, offset = 0x4, fixed_abs, tag = 'smem constant byte address 0x4 - core index']
  #allocation1 [shape = 'u32[144,128]{1,0:T(1,128)}', space=vmem, size = 0x12000, scoped, tag = 'internal scratch']
  #allocation2 [shape = 'f32[128,128]{1,0:T(8,128)}', space=vmem, size = 0x10000, scoped, tag = 'scratch operand']
  #allocation3 [shape = 's32[1]{0}', space=sflag, size = 0x4, scoped, tag = 'scoped memory for tpu_custom_call.1']
  #allocation4 [shape = 'u8[512]{0}', space=smem, size = 0x200, scoped, tag = 'prefetched SMEM operand 0']
  #allocation5 [shape = 'u8[512]{0}', space=smem, size = 0x200, scoped, tag = 'prefetched SMEM operand 1']
  %s0 = inlined_call_operand.hbm [shape: s32[4], index: 0, kind: input, shape index: {}]
  %s1 = inlined_call_operand.vmem [shape: s32[4], index: 1, kind: input, shape index: {}]
  %s2 = inlined_call_operand.hbm [shape: bf16[256,256], index: 2, kind: input, shape index: {}]
  %s3 = inlined_call_operand.hbm [shape: bf16[256,128], index: 3, kind: input, shape index: {}]
  %s4 = inlined_call_operand.hbm [shape: bf16[256,128], index: 4, kind: input, shape index: {}]
  %s5 = inlined_call_operand.hbm [shape: bf16[128,256], index: 5, kind: input, shape index: {}]
  %s6 = inlined_call_operand.hbm [shape: bf16[128,256], index: 6, kind: input, shape index: {}]
  %s7 = inlined_call_operand.vmem [shape: f32[1,256], index: 7, kind: input, shape index: {}]
  %s8 = inlined_call_operand.hbm [shape: bf16[256,128], index: 8, kind: input, shape index: {}]
  %s9 = inlined_call_operand.hbm [shape: bf16[256,128], index: 9, kind: input, shape index: {}]
  %s10 = inlined_call_operand.vmem [shape: f32[1,128], index: 10, kind: input, shape index: {}]
  %s11 = inlined_call_operand.hbm [shape: bf16[256,128], index: 11, kind: output, shape index: {0}]
  %s12 = inlined_call_operand.hbm [shape: f32[256,128], index: 12, kind: output, shape index: {1}]
  %13 = xla_tuple %s11, %s12
  %s14 = sld [smem:[#allocation0]]
  $region117: #{tpu_custom_call.1} parent=0
    _
  %s16 = ssub.s32 1, %s14
  %s17 = scalar_select 0, %s16, %s14
  %19 = dma.hbm_to_smem %s0, 16, [#allocation4], [#allocation3]
  %s20 = sshll.u32 %s1, 4
  %s21 = int_to_ptr.vmem [resolvable:$true] %s20
  %23 = dma.vmem_to_smem %s21, 16, [#allocation5], [#allocation3]
  %24 = dma.done [#allocation3], 32
  %25 = sfence
  $region1: #{tpu_custom_call.1} parent=0
    #allocation6 [shape = 'u8[65536]{0}', space=vmem, size = 0x10000, scoped, tag = 'input window, operand 2']
    #allocation7 [shape = 's32[2]{0}', space=sflag, size = 0x8, scoped, tag = 'scoped memory for tpu_custom_call.1']
    #allocation8 [shape = 's32[2]{0}', space=sflag, size = 0x8, scoped, tag = 'scoped memory for tpu_custom_call.1']
    #allocation9 [shape = 'u8[65536]{0}', space=vmem, size = 0x10000, scoped, tag = 'input window, operand 3']
    #allocation10 [shape = 's32[2]{0}', space=sflag, size = 0x8, scoped, tag = 'scoped memory for tpu_custom_call.1']
    #allocation11 [shape = 'u8[65536]{0}', space=vmem, size = 0x10000, scoped, tag = 'input window, operand 4']
    #allocation12 [shape = 'u8[65536]{0}', space=vmem, size = 0x10000, scoped, tag = 'input window, operand 5, single buffered']
    #allocation13 [shape = 's32[1]{0}', space=sflag, size = 0x4, scoped, tag = 'scoped memory for tpu_custom_call.1']
    #allocation14 [shape = 'u8[65536]{0}', space=vmem, size = 0x10000, scoped, tag = 'input window, operand 6, single buffered']
    #allocation15 [shape = 'u8[65536]{0}', space=vmem, size = 0x10000, scoped, tag = 'input window, operand 8, single buffered']
    #allocation16 [shape = 's32[1]{0}', space=sflag, size = 0x4, scoped, tag = 'scoped memory for tpu_custom_call.1']
    #allocation17 [shape = 'u8[65536]{0}', space=vmem, size = 0x10000, scoped, tag = 'input window, operand 9, single buffered']
    #allocation18 [shape = 'u8[65536]{0}', space=vmem, size = 0x10000, scoped, tag = 'output window, operand 0']
    #allocation19 [shape = 'u8[131072]{0}', space=vmem, size = 0x20000, scoped, tag = 'output window, operand 1']
    #allocation20 [shape = 's32[2]{0}', space=sflag, size = 0x8, scoped, tag = 'scoped memory for tpu_custom_call.1']
    %26 = vsyncpa [#allocation7], 0
    %s27 = scalar_lea.sflag [#allocation7], 1
    %28 = vsyncpa %s27, 0
    %29 = vsyncpa [#allocation10], 0
    %s30 = scalar_lea.sflag [#allocation10], 1
    %31 = vsyncpa %s30, 0
    %32 = vsyncpa [#allocation13], 0
    %33 = vsyncpa [#allocation16], 0
    %34 = vsyncpa [#allocation8], 0
    %s35 = scalar_lea.sflag [#allocation8], 1
    %36 = vsyncpa %s35, 0
    %37 = vsyncpa [#allocation20], 0
    %s38 = scalar_lea.sflag [#allocation20], 1
    %39 = vsyncpa %s38, 0
    loop: start=0, step=1, limit=6
    $region2: #{tpu_custom_call.1} parent=1 // loop_pre_header
      _
    $region3: #{tpu_custom_call.1} parent=1 // loop_header
      %s41 = sphi 0, %s45
      %p42 = scmp.ge.s32.totalorder %s41, 6
      %s48 = sphi 0, %s60
      %s49 = sphi 0, %s56
      %s50 = sphi 0, %s48
      %s51 = sphi 0, %s49
      %s52 = sphi 0, %s50
      %s53 = sphi 0, %s51
      %s71 = sphi 0, %s73
      %s74 = sphi 0, %s71
      %s75 = sphi 0, %s74
      %s91 = sphi 0, %s75
      %s103 = sphi 0, %s105
      %s106 = sphi 0, %s103
      %s107 = sphi 0, %s106
      %s123 = sphi 0, %s107
      %s129 = sphi 0, %s131
      %s132 = sphi 0, %s129
      %s133 = sphi 0, %s132
      %s149 = sphi 0, %s133
      %s153 = sphi 0, %s153
      %s155 = sphi 0, %s153
      %s156 = sphi 0, %s155
      %s170 = sphi 0, %s156
      %s174 = sphi 0, %s174
      %s176 = sphi 0, %s174
      %s177 = sphi 0, %s176
      %s191 = sphi 0, %s177
      %s195 = sphi 0, %s195
      %s197 = sphi 0, %s195
      %s198 = sphi 0, %s197
      %s212 = sphi 0, %s198
      %s216 = sphi 0, %s216
      %s218 = sphi 0, %s216
      %s219 = sphi 0, %s218
      %s233 = sphi 0, %s219
      %s237 = sphi 0, %s237
      %s239 = sphi 0, %s237
      %s240 = sphi 0, %s239
      %s254 = sphi 0, %s240
      %s258 = sphi 0, %s258
      %s260 = sphi 0, %s258
      %s261 = sphi 0, %s260
      %s275 = sphi 0, %s261
      %s281 = sphi 0, %s283
      %s284 = sphi 0, %s281
      %s285 = sphi 0, %s284
      %s301 = sphi 0, %s285
      %s307 = sphi 0, %s309
      %s310 = sphi 0, %s307
      %s311 = sphi 0, %s310
      %s327 = sphi 0, %s311
    $region4: #{tpu_custom_call.1} parent=1 // loop_header_branch
      %44 = sbr.rel (%p42) target = $region8
    $region5: #{tpu_custom_call.1} parent=1 // loop_body
      %s46 = ssub.s32 %s41, 1
      %s47 = ssub.s32 %s41, 2
      %s54 = sadd.s32 1, %s49
      %p55 = scmp.ge.s32.totalorder %s54, 2
      %s56 = scalar_select %p55, 0, %s54
      %s57 = sadd.s32 1, %s48
      %s58 = scalar_select %p55, %s57, %s48
      %p59 = scmp.ge.s32.totalorder %s58, 2
      %s60 = scalar_select %p59, 0, %s58
      %s61 = smul.u32 %s48, 2
      %s62 = sadd.s32 %s61, %s49
      %s63 = sld [smem:[#allocation4 + %s62]]
      %s64 = smul.u32 %s60, 2
      %s65 = sadd.s32 %s64, %s56
      %s66 = sld [smem:[#allocation4 + %s65]]
      %s67 = ssub.s32 %s48, %s60
      %s68 = ssub.s32 %s63, %s66
      %s69 = sor.u32 %s67, %s68
      %p70 = scmp.eq.s32.totalorder %s69, 0
      %s72 = sadd.s32 %s71, 1
      %s73 = scalar_select %p70, %s71, %s72
      %p76 = pneg %p70
      %p77 = scmp.eq.s32.totalorder %s41, 3
      %p78 = por %p76, %p77
      %p79 = scmp.ne.s32.totalorder %s71, %s74
      %p80 = scmp.eq.s32.totalorder %s41, 0
      %p81 = por %p79, %p80
      %p82 = scmp.ne.s32.totalorder %s71, %s74
      %p83 = scmp.eq.s32.totalorder %s46, 3
      %p84 = por %p82, %p83
      %p85 = scmp.ne.s32.totalorder %s74, %s75
      %p86 = scmp.eq.s32.totalorder %s46, 0
      %p87 = por %p85, %p86
      %p88 = scmp.ne.s32.totalorder %s74, %s75
      %p89 = scmp.eq.s32.totalorder %s47, 3
      %p90 = por %p88, %p89
      %p92 = scmp.ne.s32.totalorder %s75, %s91
      %p93 = scmp.eq.s32.totalorder %s47, 0
      %p94 = por %p92, %p93
      %s95 = smul.u32 %s48, 2
      %s96 = sadd.s32 %s95, %s49
      %s97 = sld [smem:[#allocation4 + %s96]]
      %s98 = smul.u32 %s60, 2
      %s99 = sadd.s32 %s98, %s56
      %s100 = sld [smem:[#allocation4 + %s99]]
      %s101 = ssub.s32 %s97, %s100
      %p102 = scmp.eq.s32.totalorder %s101, 0
      %s104 = sadd.s32 %s103, 1
      %s105 = scalar_select %p102, %s103, %s104
      %p108 = pneg %p102
      %p109 = scmp.eq.s32.totalorder %s41, 3
      %p110 = por %p108, %p109
      %p111 = scmp.ne.s32.totalorder %s103, %s106
      %p112 = scmp.eq.s32.totalorder %s41, 0
      %p113 = por %p111, %p112
      %p114 = scmp.ne.s32.totalorder %s103, %s106
      %p115 = scmp.eq.s32.totalorder %s46, 3
      %p116 = por %p114, %p115
      %p117 = scmp.ne.s32.totalorder %s106, %s107
      %p118 = scmp.eq.s32.totalorder %s46, 0
      %p119 = por %p117, %p118
      %p120 = scmp.ne.s32.totalorder %s106, %s107
      %p121 = scmp.eq.s32.totalorder %s47, 3
      %p122 = por %p120, %p121
      %p124 = scmp.ne.s32.totalorder %s107, %s123
      %p125 = scmp.eq.s32.totalorder %s47, 0
      %p126 = por %p124, %p125
      %s127 = ssub.s32 %s48, %s60
      %p128 = scmp.eq.s32.totalorder %s127, 0
      %s130 = sadd.s32 %s129, 1
      %s131 = scalar_select %p128, %s129, %s130
      %p134 = pneg %p128
      %p135 = scmp.eq.s32.totalorder %s41, 3
      %p136 = por %p134, %p135
      %p137 = scmp.ne.s32.totalorder %s129, %s132
      %p138 = scmp.eq.s32.totalorder %s41, 0
      %p139 = por %p137, %p138
      %p140 = scmp.ne.s32.totalorder %s129, %s132
      %p141 = scmp.eq.s32.totalorder %s46, 3
      %p142 = por %p140, %p141
      %p143 = scmp.ne.s32.totalorder %s132, %s133
      %p144 = scmp.eq.s32.totalorder %s46, 0
      %p145 = por %p143, %p144
      %p146 = scmp.ne.s32.totalorder %s132, %s133
      %p147 = scmp.eq.s32.totalorder %s47, 3
      %p148 = por %p146, %p147
      %p150 = scmp.ne.s32.totalorder %s133, %s149
      %p151 = scmp.eq.s32.totalorder %s47, 0
      %p152 = por %p150, %p151
      %s154 = sadd.s32 %s153, 1
      %p157 = scmp.eq.s32.totalorder %s41, 3
      %p158 = scmp.ne.s32.totalorder %s153, %s155
      %p159 = scmp.eq.s32.totalorder %s41, 0
      %p160 = por %p158, %p159
      %p161 = scmp.ne.s32.totalorder %s153, %s155
      %p162 = scmp.eq.s32.totalorder %s46, 3
      %p163 = por %p161, %p162
      %p164 = scmp.ne.s32.totalorder %s155, %s156
      %p165 = scmp.eq.s32.totalorder %s46, 0
      %p166 = por %p164, %p165
      %p167 = scmp.ne.s32.totalorder %s155, %s156
      %p168 = scmp.eq.s32.totalorder %s47, 3
      %p169 = por %p167, %p168
      %p171 = scmp.ne.s32.totalorder %s156, %s170
      %p172 = scmp.eq.s32.totalorder %s47, 0
      %p173 = por %p171, %p172
      %s175 = sadd.s32 %s174, 1
      %p178 = scmp.eq.s32.totalorder %s41, 3
      %p179 = scmp.ne.s32.totalorder %s174, %s176
      %p180 = scmp.eq.s32.totalorder %s41, 0
      %p181 = por %p179, %p180
      %p182 = scmp.ne.s32.totalorder %s174, %s176
      %p183 = scmp.eq.s32.totalorder %s46, 3
      %p184 = por %p182, %p183
      %p185 = scmp.ne.s32.totalorder %s176, %s177
      %p186 = scmp.eq.s32.totalorder %s46, 0
      %p187 = por %p185, %p186
      %p188 = scmp.ne.s32.totalorder %s176, %s177
      %p189 = scmp.eq.s32.totalorder %s47, 3
      %p190 = por %p188, %p189
      %p192 = scmp.ne.s32.totalorder %s177, %s191
      %p193 = scmp.eq.s32.totalorder %s47, 0
      %p194 = por %p192, %p193
      %s196 = sadd.s32 %s195, 1
      %p199 = scmp.eq.s32.totalorder %s41, 3
      %p200 = scmp.ne.s32.totalorder %s195, %s197
      %p201 = scmp.eq.s32.totalorder %s41, 0
      %p202 = por %p200, %p201
      %p203 = scmp.ne.s32.totalorder %s195, %s197
      %p204 = scmp.eq.s32.totalorder %s46, 3
      %p205 = por %p203, %p204
      %p206 = scmp.ne.s32.totalorder %s197, %s198
      %p207 = scmp.eq.s32.totalorder %s46, 0
      %p208 = por %p206, %p207
      %p209 = scmp.ne.s32.totalorder %s197, %s198
      %p210 = scmp.eq.s32.totalorder %s47, 3
      %p211 = por %p209, %p210
      %p213 = scmp.ne.s32.totalorder %s198, %s212
      %p214 = scmp.eq.s32.totalorder %s47, 0
      %p215 = por %p213, %p214
      %s217 = sadd.s32 %s216, 1
      %p220 = scmp.eq.s32.totalorder %s41, 3
      %p221 = scmp.ne.s32.totalorder %s216, %s218
      %p222 = scmp.eq.s32.totalorder %s41, 0
      %p223 = por %p221, %p222
      %p224 = scmp.ne.s32.totalorder %s216, %s218
      %p225 = scmp.eq.s32.totalorder %s46, 3
      %p226 = por %p224, %p225
      %p227 = scmp.ne.s32.totalorder %s218, %s219
      %p228 = scmp.eq.s32.totalorder %s46, 0
      %p229 = por %p227, %p228
      %p230 = scmp.ne.s32.totalorder %s218, %s219
      %p231 = scmp.eq.s32.totalorder %s47, 3
      %p232 = por %p230, %p231
      %p234 = scmp.ne.s32.totalorder %s219, %s233
      %p235 = scmp.eq.s32.totalorder %s47, 0
      %p236 = por %p234, %p235
      %s238 = sadd.s32 %s237, 1
      %p241 = scmp.eq.s32.totalorder %s41, 3
      %p242 = scmp.ne.s32.totalorder %s237, %s239
      %p243 = scmp.eq.s32.totalorder %s41, 0
      %p244 = por %p242, %p243
      %p245 = scmp.ne.s32.totalorder %s237, %s239
      %p246 = scmp.eq.s32.totalorder %s46, 3
      %p247 = por %p245, %p246
      %p248 = scmp.ne.s32.totalorder %s239, %s240
      %p249 = scmp.eq.s32.totalorder %s46, 0
      %p250 = por %p248, %p249
      %p251 = scmp.ne.s32.totalorder %s239, %s240
      %p252 = scmp.eq.s32.totalorder %s47, 3
      %p253 = por %p251, %p252
      %p255 = scmp.ne.s32.totalorder %s240, %s254
      %p256 = scmp.eq.s32.totalorder %s47, 0
      %p257 = por %p255, %p256
      %s259 = sadd.s32 %s258, 1
      %p262 = scmp.eq.s32.totalorder %s41, 3
      %p263 = scmp.ne.s32.totalorder %s258, %s260
      %p264 = scmp.eq.s32.totalorder %s41, 0
      %p265 = por %p263, %p264
      %p266 = scmp.ne.s32.totalorder %s258, %s260
      %p267 = scmp.eq.s32.totalorder %s46, 3
      %p268 = por %p266, %p267
      %p269 = scmp.ne.s32.totalorder %s260, %s261
      %p270 = scmp.eq.s32.totalorder %s46, 0
      %p271 = por %p269, %p270
      %p272 = scmp.ne.s32.totalorder %s260, %s261
      %p273 = scmp.eq.s32.totalorder %s47, 3
      %p274 = por %p272, %p273
      %p276 = scmp.ne.s32.totalorder %s261, %s275
      %p277 = scmp.eq.s32.totalorder %s47, 0
      %p278 = por %p276, %p277
      %s279 = ssub.s32 %s48, %s60
      %p280 = scmp.eq.s32.totalorder %s279, 0
      %s282 = sadd.s32 %s281, 1
      %s283 = scalar_select %p280, %s281, %s282
      %p286 = pneg %p280
      %p287 = scmp.eq.s32.totalorder %s41, 3
      %p288 = por %p286, %p287
      %p289 = scmp.ne.s32.totalorder %s281, %s284
      %p290 = scmp.eq.s32.totalorder %s41, 0
      %p291 = por %p289, %p290
      %p292 = scmp.ne.s32.totalorder %s281, %s284
      %p293 = scmp.eq.s32.totalorder %s46, 3
      %p294 = por %p292, %p293
      %p295 = scmp.ne.s32.totalorder %s284, %s285
      %p296 = scmp.eq.s32.totalorder %s46, 0
      %p297 = por %p295, %p296
      %p298 = scmp.ne.s32.totalorder %s284, %s285
      %p299 = scmp.eq.s32.totalorder %s47, 3
      %p300 = por %p298, %p299
      %p302 = scmp.ne.s32.totalorder %s285, %s301
      %p303 = scmp.eq.s32.totalorder %s47, 0
      %p304 = por %p302, %p303
      %s305 = ssub.s32 %s48, %s60
      %p306 = scmp.eq.s32.totalorder %s305, 0
      %s308 = sadd.s32 %s307, 1
      %s309 = scalar_select %p306, %s307, %s308
      %p312 = pneg %p306
      %p313 = scmp.eq.s32.totalorder %s41, 3
      %p314 = por %p312, %p313
      %p315 = scmp.ne.s32.totalorder %s307, %s310
      %p316 = scmp.eq.s32.totalorder %s41, 0
      %p317 = por %p315, %p316
      %p318 = scmp.ne.s32.totalorder %s307, %s310
      %p319 = scmp.eq.s32.totalorder %s46, 3
      %p320 = por %p318, %p319
      %p321 = scmp.ne.s32.totalorder %s310, %s311
      %p322 = scmp.eq.s32.totalorder %s46, 0
      %p323 = por %p321, %p322
      %p324 = scmp.ne.s32.totalorder %s310, %s311
      %p325 = scmp.eq.s32.totalorder %s47, 3
      %p326 = por %p324, %p325
      %p328 = scmp.ne.s32.totalorder %s311, %s327
      %p329 = scmp.eq.s32.totalorder %s47, 0
      %p330 = por %p328, %p329
      %p331 = scmp.le.s32.totalorder 1, %s41
      %p332 = scmp.lt.s32.totalorder %s41, 5
      %p333 = pnand %p331, %p332
      %p334 = pneg %p333
      // Predicated region
      $region9: #{tpu_custom_call.1} parent=5 // pred_check
        _
      $region10: #{tpu_custom_call.1} parent=5 // pred_check_branch
        %336 = sbr.rel (%p333) target = $region12
      $region11: #{tpu_custom_call.1} parent=5 // pred_region
        %s337 = ssub.s32 %s41, 1
        // Predicated region
        $region13: #{tpu_custom_call.1} parent=11 // pred_check
          %p338 = pneg %p166
        $region14: #{tpu_custom_call.1} parent=11 // pred_check_branch
          %340 = sbr.rel (%p338) target = $region16
        $region15: #{tpu_custom_call.1} parent=11 // pred_region
          %s342 = ssub.s32 2048, 2048
          %343 = vsyncadd [#allocation13], %s342
          %s344 = sshll.u32 [#allocation12], 4
          %s345 = int_to_ptr.vmem [resolvable:$true] %s344
          %350 = dma.hbm_to_vmem [thread:$0]  %s5, 2048, %s345, [#allocation13], 128, 128, 8
        $region16: #{tpu_custom_call.1} parent=11 // pred_fallthru
          _
        // Predicated region
        $region17: #{tpu_custom_call.1} parent=11 // pred_check
          %p351 = pneg %p187
        $region18: #{tpu_custom_call.1} parent=11 // pred_check_branch
          %353 = sbr.rel (%p351) target = $region20
        $region19: #{tpu_custom_call.1} parent=11 // pred_region
          %s355 = ssub.s32 2048, 2048
          %356 = vsyncadd [#allocation13], %s355
          %s357 = sshll.u32 [#allocation14], 4
          %s358 = int_to_ptr.vmem [resolvable:$true] %s357
          %363 = dma.hbm_to_vmem [thread:$0]  %s6, 2048, %s358, [#allocation13], 128, 128, 8
        $region20: #{tpu_custom_call.1} parent=11 // pred_fallthru
          _
        // Predicated region
        $region21: #{tpu_custom_call.1} parent=11 // pred_check
          %p364 = pneg %p208
        $region22: #{tpu_custom_call.1} parent=11 // pred_check_branch
          %366 = sbr.rel (%p364) target = $region24
        $region23: #{tpu_custom_call.1} parent=11 // pred_region
          _
        $region24: #{tpu_custom_call.1} parent=11 // pred_fallthru
          _
        // Predicated region
        $region25: #{tpu_custom_call.1} parent=11 // pred_check
          %p367 = pneg %p229
        $region26: #{tpu_custom_call.1} parent=11 // pred_check_branch
          %369 = sbr.rel (%p367) target = $region28
        $region27: #{tpu_custom_call.1} parent=11 // pred_region
          %s371 = ssub.s32 2048, 2048
          %372 = vsyncadd [#allocation16], %s371
          %s373 = sshll.u32 [#allocation15], 4
          %s374 = int_to_ptr.vmem [resolvable:$true] %s373
          %379 = dma.hbm_to_vmem [thread:$0]  %s8, 2048, %s374, [#allocation16], 64, 64, 4
        $region28: #{tpu_custom_call.1} parent=11 // pred_fallthru
          _
        // Predicated region
        $region29: #{tpu_custom_call.1} parent=11 // pred_check
          %p380 = pneg %p250
        $region30: #{tpu_custom_call.1} parent=11 // pred_check_branch
          %382 = sbr.rel (%p380) target = $region32
        $region31: #{tpu_custom_call.1} parent=11 // pred_region
          %s384 = ssub.s32 2048, 2048
          %385 = vsyncadd [#allocation16], %s384
          %s386 = sshll.u32 [#allocation17], 4
          %s387 = int_to_ptr.vmem [resolvable:$true] %s386
          %392 = dma.hbm_to_vmem [thread:$0]  %s9, 2048, %s387, [#allocation16], 64, 64, 4
        $region32: #{tpu_custom_call.1} parent=11 // pred_fallthru
          _
        // Predicated region
        $region33: #{tpu_custom_call.1} parent=11 // pred_check
          %p393 = pneg %p271
        $region34: #{tpu_custom_call.1} parent=11 // pred_check_branch
          %395 = sbr.rel (%p393) target = $region36
        $region35: #{tpu_custom_call.1} parent=11 // pred_region
          _
        $region36: #{tpu_custom_call.1} parent=11 // pred_fallthru
          _
      $region12: #{tpu_custom_call.1} parent=5 // pred_fallthru
        _
      %p396 = scmp.lt.s32.totalorder %s41, 4
      // Predicated region
      $region37: #{tpu_custom_call.1} parent=5 // pred_check
        %p397 = pneg %p396
      $region38: #{tpu_custom_call.1} parent=5 // pred_check_branch
        %399 = sbr.rel (%p397) target = $region40
      $region39: #{tpu_custom_call.1} parent=5 // pred_region
        // Predicated region
        $region41: #{tpu_custom_call.1} parent=39 // pred_check
          %p400 = pneg %p81
        $region42: #{tpu_custom_call.1} parent=39 // pred_check_branch
          %402 = sbr.rel (%p400) target = $region44
        $region43: #{tpu_custom_call.1} parent=39 // pred_region
          %s403 = sand.u32 %s71, 1
          %s404 = scalar_lea.sflag [#allocation7], %s403
          %s405 = sand.u32 %s71, 1
          %s406 = smul.addr %s405, 64
          %s407 = scalar_lea.vmem [#allocation6], %s406
          %s408 = smul.u32 %s48, 2
          %s409 = sadd.s32 %s408, %s49
          %s410 = sld [smem:[#allocation4 + %s409]]
          %s411 = smul.u32 16, %s48
          %s413 = ssub.s32 1024, 1024
          %414 = vsyncadd %s404, %s413
          %s415 = smul.addr %s411, 2
          %s416 = sadd.s32 %s410, %s415
          %s417 = smul.addr %s416, 64
          %s418 = scalar_lea.hbm %s2, %s417
          %s419 = sshll.u32 %s407, 4
          %s420 = int_to_ptr.vmem [resolvable:$true] %s419
          %425 = dma.hbm_to_vmem [thread:$0]  %s418, 1024, %s420, %s404, 128, 64, 4
        $region44: #{tpu_custom_call.1} parent=39 // pred_fallthru
          _
        // Predicated region
        $region45: #{tpu_custom_call.1} parent=39 // pred_check
          %p426 = pneg %p113
        $region46: #{tpu_custom_call.1} parent=39 // pred_check_branch
          %428 = sbr.rel (%p426) target = $region48
        $region47: #{tpu_custom_call.1} parent=39 // pred_region
          %s429 = sand.u32 %s41, 1
          %s430 = scalar_lea.sflag [#allocation10], %s429
          %s431 = sand.u32 %s103, 1
          %s432 = smul.addr %s431, 64
          %s433 = scalar_lea.vmem [#allocation9], %s432
          %s434 = smul.u32 %s48, 2
          %s435 = sadd.s32 %s434, %s49
          %s436 = sld [smem:[#allocation4 + %s435]]
          %s437 = smul.u32 16, %s436
          %s439 = ssub.s32 1024, 1024
          %440 = vsyncadd %s430, %s439
          %s441 = smul.addr %s437, 64
          %s442 = scalar_lea.hbm %s3, %s441
          %s443 = sshll.u32 %s433, 4
          %s444 = int_to_ptr.vmem [resolvable:$true] %s443
          %449 = dma.hbm_to_vmem [thread:$0]  %s442, 1024, %s444, %s430, 64, 64, 4
        $region48: #{tpu_custom_call.1} parent=39 // pred_fallthru
          _
        // Predicated region
        $region49: #{tpu_custom_call.1} parent=39 // pred_check
          %p450 = pneg %p139
        $region50: #{tpu_custom_call.1} parent=39 // pred_check_branch
          %452 = sbr.rel (%p450) target = $region52
        $region51: #{tpu_custom_call.1} parent=39 // pred_region
          %s453 = sand.u32 %s41, 1
          %s454 = scalar_lea.sflag [#allocation10], %s453
          %s455 = sand.u32 %s129, 1
          %s456 = smul.addr %s455, 64
          %s457 = scalar_lea.vmem [#allocation11], %s456
          %s458 = smul.u32 16, %s48
          %s460 = ssub.s32 1024, 1024
          %461 = vsyncadd %s454, %s460
          %s462 = smul.addr %s458, 64
          %s463 = scalar_lea.hbm %s4, %s462
          %s464 = sshll.u32 %s457, 4
          %s465 = int_to_ptr.vmem [resolvable:$true] %s464
          %470 = dma.hbm_to_vmem [thread:$0]  %s463, 1024, %s465, %s454, 64, 64, 4
        $region52: #{tpu_custom_call.1} parent=39 // pred_fallthru
          _
      $region40: #{tpu_custom_call.1} parent=5 // pred_fallthru
        _
      %p471 = scmp.le.s32.totalorder 1, %s41
      %p472 = scmp.lt.s32.totalorder %s41, 5
      %p473 = pnand %p471, %p472
      %p474 = pneg %p473
      // Predicated region
      $region53: #{tpu_custom_call.1} parent=5 // pred_check
        _
      $region54: #{tpu_custom_call.1} parent=5 // pred_check_branch
        %476 = sbr.rel (%p473) target = $region56
      $region55: #{tpu_custom_call.1} parent=5 // pred_region
        %s477 = ssub.s32 %s41, 1
        %s478 = sand.u32 %s74, 1
        %s479 = scalar_lea.sflag [#allocation7], %s478
        %s480 = sand.u32 %s74, 1
        %s481 = smul.addr %s480, 64
        %s482 = scalar_lea.vmem [#allocation6], %s481
        // Predicated region
        $region57: #{tpu_custom_call.1} parent=55 // pred_check
          %p483 = pneg %p87
        $region58: #{tpu_custom_call.1} parent=55 // pred_check_branch
          %485 = sbr.rel (%p483) target = $region60
        $region59: #{tpu_custom_call.1} parent=55 // pred_region
          %486 = dma.done %s479, 1024
        $region60: #{tpu_custom_call.1} parent=55 // pred_fallthru
          _
        %s487 = sand.u32 %s46, 1
        %s488 = scalar_lea.sflag [#allocation10], %s487
        %s489 = sand.u32 %s106, 1
        %s490 = smul.addr %s489, 64
        %s491 = scalar_lea.vmem [#allocation9], %s490
        // Predicated region
        $region61: #{tpu_custom_call.1} parent=55 // pred_check
          %p492 = pneg %p119
        $region62: #{tpu_custom_call.1} parent=55 // pred_check_branch
          %494 = sbr.rel (%p492) target = $region64
        $region63: #{tpu_custom_call.1} parent=55 // pred_region
          %495 = dma.done %s488, 1024
        $region64: #{tpu_custom_call.1} parent=55 // pred_fallthru
          _
        %s496 = sand.u32 %s46, 1
        %s497 = scalar_lea.sflag [#allocation10], %s496
        %s498 = sand.u32 %s132, 1
        %s499 = smul.addr %s498, 64
        %s500 = scalar_lea.vmem [#allocation11], %s499
        // Predicated region
        $region65: #{tpu_custom_call.1} parent=55 // pred_check
          %p501 = pneg %p145
        $region66: #{tpu_custom_call.1} parent=55 // pred_check_branch
          %503 = sbr.rel (%p501) target = $region68
        $region67: #{tpu_custom_call.1} parent=55 // pred_region
          %504 = dma.done %s497, 1024
        $region68: #{tpu_custom_call.1} parent=55 // pred_fallthru
          _
        // Predicated region
        $region69: #{tpu_custom_call.1} parent=55 // pred_check
          %p505 = pneg %p166
        $region70: #{tpu_custom_call.1} parent=55 // pred_check_branch
          %507 = sbr.rel (%p505) target = $region72
        $region71: #{tpu_custom_call.1} parent=55 // pred_region
          %508 = dma.done [#allocation13], 2048
        $region72: #{tpu_custom_call.1} parent=55 // pred_fallthru
          _
        // Predicated region
        $region73: #{tpu_custom_call.1} parent=55 // pred_check
          %p509 = pneg %p187
        $region74: #{tpu_custom_call.1} parent=55 // pred_check_branch
          %511 = sbr.rel (%p509) target = $region76
        $region75: #{tpu_custom_call.1} parent=55 // pred_region
          %512 = dma.done [#allocation13], 2048
        $region76: #{tpu_custom_call.1} parent=55 // pred_fallthru
          _
        // Predicated region
        $region77: #{tpu_custom_call.1} parent=55 // pred_check
          %p513 = pneg %p229
        $region78: #{tpu_custom_call.1} parent=55 // pred_check_branch
          %515 = sbr.rel (%p513) target = $region80
        $region79: #{tpu_custom_call.1} parent=55 // pred_region
          %516 = dma.done [#allocation16], 2048
        $region80: #{tpu_custom_call.1} parent=55 // pred_fallthru
          _
        // Predicated region
        $region81: #{tpu_custom_call.1} parent=55 // pred_check
          %p517 = pneg %p250
        $region82: #{tpu_custom_call.1} parent=55 // pred_check_branch
          %519 = sbr.rel (%p517) target = $region84
        $region83: #{tpu_custom_call.1} parent=55 // pred_region
          %520 = dma.done [#allocation16], 2048
        $region84: #{tpu_custom_call.1} parent=55 // pred_fallthru
          _
        %s521 = sand.u32 %s74, 1
        %s522 = scalar_lea.sflag [#allocation7], %s521
        %s523 = sand.u32 %s74, 1
        %s524 = smul.addr %s523, 64
        %s525 = scalar_lea.vmem [#allocation6], %s524
        %p526 = pneg %p87
        %p527 = pneg %p84
        %s528 = sand.u32 %s46, 1
        %s529 = scalar_lea.sflag [#allocation10], %s528
        %s530 = sand.u32 %s106, 1
        %s531 = smul.addr %s530, 64
        %s532 = scalar_lea.vmem [#allocation9], %s531
        %p533 = pneg %p119
        %p534 = pneg %p116
        %s535 = sand.u32 %s46, 1
        %s536 = scalar_lea.sflag [#allocation10], %s535
        %s537 = sand.u32 %s132, 1
        %s538 = smul.addr %s537, 64
        %s539 = scalar_lea.vmem [#allocation11], %s538
        %p540 = pneg %p145
        %p541 = pneg %p142
        %p542 = pneg %p166
        %p543 = pneg %p163
        %p544 = pneg %p187
        %p545 = pneg %p184
        %p546 = pneg %p208
        %p547 = pneg %p205
        %p548 = pneg %p229
        %p549 = pneg %p226
        %p550 = pneg %p250
        %p551 = pneg %p247
        %p552 = pneg %p271
        %p553 = pneg %p268
        %p554 = pneg %p297
        %p555 = pneg %p294
        %s556 = sand.u32 %s284, 1
        %s557 = scalar_lea.sflag [#allocation8], %s556
        %s558 = sand.u32 %s284, 1
        %s559 = smul.addr %s558, 64
        %s560 = scalar_lea.vmem [#allocation18], %s559
        %p561 = pneg %p323
        %p562 = pneg %p320
        %s563 = sand.u32 %s310, 1
        %s564 = scalar_lea.sflag [#allocation20], %s563
        %s565 = sand.u32 %s310, 1
        %s566 = smul.addr %s565, 128
        %s567 = scalar_lea.vmem [#allocation19], %s566
        %s568 = smul.u32 %s50, 2
        %s569 = sadd.s32 %s568, %s51
        %s570 = sld [smem:[#allocation4 + %s569]]
        %s571 = smul.u32 16, %s50
        %s572 = smul.u32 %s50, 2
        %s573 = sadd.s32 %s572, %s51
        %s574 = sld [smem:[#allocation4 + %s573]]
        %s575 = smul.u32 16, %s574
        %s576 = smul.u32 16, %s50
        %s577 = smul.u32 16, %s50
        %s578 = smul.u32 16, %s50
        %p580 = scmp.eq.s32.totalorder %s51, 0
        // Predicated region
        $region85: #{tpu_custom_call.1} parent=55 // pred_check
          %p581 = pneg %p580
        $region86: #{tpu_custom_call.1} parent=55 // pred_check_branch
          %583 = sbr.rel (%p581) target = $region88
        $region87: #{tpu_custom_call.1} parent=55 // pred_region
          %584 = vst [vmem:[#allocation2] sm:$0xff] 0.0
          %585 = vst [vmem:[#allocation2 + $0x8] sm:$0xff] 0.0
          %586 = vst [vmem:[#allocation2 + $0x10] sm:$0xff] 0.0
          %587 = vst [vmem:[#allocation2 + $0x18] sm:$0xff] 0.0
          %588 = vst [vmem:[#allocation2 + $0x20] sm:$0xff] 0.0
          %589 = vst [vmem:[#allocation2 + $0x28] sm:$0xff] 0.0
          %590 = vst [vmem:[#allocation2 + $0x30] sm:$0xff] 0.0
          %591 = vst [vmem:[#allocation2 + $0x38] sm:$0xff] 0.0
          %592 = vst [vmem:[#allocation2 + $0x40] sm:$0xff] 0.0
          %593 = vst [vmem:[#allocation2 + $0x48] sm:$0xff] 0.0
          %594 = vst [vmem:[#allocation2 + $0x50] sm:$0xff] 0.0
          %595 = vst [vmem:[#allocation2 + $0x58] sm:$0xff] 0.0
          %596 = vst [vmem:[#allocation2 + $0x60] sm:$0xff] 0.0
          %597 = vst [vmem:[#allocation2 + $0x68] sm:$0xff] 0.0
          %598 = vst [vmem:[#allocation2 + $0x70] sm:$0xff] 0.0
          %599 = vst [vmem:[#allocation2 + $0x78] sm:$0xff] 0.0
        $region88: #{tpu_custom_call.1} parent=55 // pred_fallthru
          _
        %s600 = smul.u32 %s50, 2
        %s601 = sadd.s32 %s600, %s51
        %s602 = sld [smem:[#allocation5 + %s601]]
        %p603 = scmp.ne.s32.totalorder %s602, 0
        // Predicated region
        $region89: #{tpu_custom_call.1} parent=55 // pred_check
          %p604 = pneg %p603
        $region90: #{tpu_custom_call.1} parent=55 // pred_check_branch
          %606 = sbr.rel (%p604) target = $region92
        $region91: #{tpu_custom_call.1} parent=55 // pred_region
          %v607 = vld [vmem:[#allocation2] sm:$0xff]
          %v608 = vld [vmem:[#allocation2 + $0x8] sm:$0xff]
          %v609 = vld [vmem:[#allocation2 + $0x10] sm:$0xff]
          %v610 = vld [vmem:[#allocation2 + $0x18] sm:$0xff]
          %v611 = vld [vmem:[#allocation2 + $0x20] sm:$0xff]
          %v612 = vld [vmem:[#allocation2 + $0x28] sm:$0xff]
          %v613 = vld [vmem:[#allocation2 + $0x30] sm:$0xff]
          %v614 = vld [vmem:[#allocation2 + $0x38] sm:$0xff]
          %v615 = vld [vmem:[#allocation2 + $0x40] sm:$0xff]
          %v616 = vld [vmem:[#allocation2 + $0x48] sm:$0xff]
          %v617 = vld [vmem:[#allocation2 + $0x50] sm:$0xff]
          %v618 = vld [vmem:[#allocation2 + $0x58] sm:$0xff]
          %v619 = vld [vmem:[#allocation2 + $0x60] sm:$0xff]
          %v620 = vld [vmem:[#allocation2 + $0x68] sm:$0xff]
          %v621 = vld [vmem:[#allocation2 + $0x70] sm:$0xff]
          %v622 = vld [vmem:[#allocation2 + $0x78] sm:$0xff]
          %v623 = vld [vmem:[%s482] sm:$0xf]
          %v624 = vld [vmem:[%s482 + $0x4] sm:$0xf]
          %v625 = vld [vmem:[%s482 + $0x8] sm:$0xf]
          %v626 = vld [vmem:[%s482 + $0xc] sm:$0xf]
          %v627 = vld [vmem:[%s482 + $0x10] sm:$0xf]
          %v628 = vld [vmem:[%s482 + $0x14] sm:$0xf]
          %v629 = vld [vmem:[%s482 + $0x18] sm:$0xf]
          %v630 = vld [vmem:[%s482 + $0x1c] sm:$0xf]
          %v631 = vld [vmem:[%s482 + $0x20] sm:$0xf]
          %v632 = vld [vmem:[%s482 + $0x24] sm:$0xf]
          %v633 = vld [vmem:[%s482 + $0x28] sm:$0xf]
          %v634 = vld [vmem:[%s482 + $0x2c] sm:$0xf]
          %v635 = vld [vmem:[%s482 + $0x30] sm:$0xf]
          %v636 = vld [vmem:[%s482 + $0x34] sm:$0xf]
          %v637 = vld [vmem:[%s482 + $0x38] sm:$0xf]
          %v638 = vld [vmem:[%s482 + $0x3c] sm:$0xf]
          %v639 = vld [vmem:[%s491] sm:$0xf]
          %v640 = vld [vmem:[%s491 + $0x4] sm:$0xf]
          %v641 = vld [vmem:[%s491 + $0x8] sm:$0xf]
          %v642 = vld [vmem:[%s491 + $0xc] sm:$0xf]
          %v643 = vld [vmem:[%s491 + $0x10] sm:$0xf]
          %v644 = vld [vmem:[%s491 + $0x14] sm:$0xf]
          %v645 = vld [vmem:[%s491 + $0x18] sm:$0xf]
          %v646 = vld [vmem:[%s491 + $0x1c] sm:$0xf]
          %v647 = vld [vmem:[%s491 + $0x20] sm:$0xf]
          %v648 = vld [vmem:[%s491 + $0x24] sm:$0xf]
          %v649 = vld [vmem:[%s491 + $0x28] sm:$0xf]
          %v650 = vld [vmem:[%s491 + $0x2c] sm:$0xf]
          %v651 = vld [vmem:[%s491 + $0x30] sm:$0xf]
          %v652 = vld [vmem:[%s491 + $0x34] sm:$0xf]
          %v653 = vld [vmem:[%s491 + $0x38] sm:$0xf]
          %v654 = vld [vmem:[%s491 + $0x3c] sm:$0xf]
          %v671 = vunpack.c.l.b16 %v623
          %v672 = vunpack.c.l.b16 %v624
          %v673 = vunpack.c.l.b16 %v625
          %v674 = vunpack.c.l.b16 %v626
          %v675 = vunpack.c.l.b16 %v627
          %v676 = vunpack.c.l.b16 %v628
          %v677 = vunpack.c.l.b16 %v629
          %v678 = vunpack.c.l.b16 %v630
          %v679 = vunpack.c.l.b16 %v631
          %v680 = vunpack.c.l.b16 %v632
          %v681 = vunpack.c.l.b16 %v633
          %v682 = vunpack.c.l.b16 %v634
          %v683 = vunpack.c.l.b16 %v635
          %v684 = vunpack.c.l.b16 %v636
          %v685 = vunpack.c.l.b16 %v637
          %v686 = vunpack.c.l.b16 %v638
          %v687 = vpack.c.b16 %v672, %v671
          %v688 = vpack.c.b16 %v674, %v673
          %v689 = vpack.c.b16 %v676, %v675
          %v690 = vpack.c.b16 %v678, %v677
          %v691 = vpack.c.b16 %v680, %v679
          %v692 = vpack.c.b16 %v682, %v681
          %v693 = vpack.c.b16 %v684, %v683
          %v694 = vpack.c.b16 %v686, %v685
          %v719 = vunpack.c.l.b16 %v639
          %v720 = vunpack.c.l.b16 %v640
          %v721 = vunpack.c.l.b16 %v641
          %v722 = vunpack.c.l.b16 %v642
          %v723 = vunpack.c.l.b16 %v643
          %v724 = vunpack.c.l.b16 %v644
          %v725 = vunpack.c.l.b16 %v645
          %v726 = vunpack.c.l.b16 %v646
          %v727 = vunpack.c.l.b16 %v647
          %v728 = vunpack.c.l.b16 %v648
          %v729 = vunpack.c.l.b16 %v649
          %v730 = vunpack.c.l.b16 %v650
          %v731 = vunpack.c.l.b16 %v651
          %v732 = vunpack.c.l.b16 %v652
          %v733 = vunpack.c.l.b16 %v653
          %v734 = vunpack.c.l.b16 %v654
          %v735 = vpack.c.b16 %v720, %v719
          %v736 = vpack.c.b16 %v722, %v721
          %v737 = vpack.c.b16 %v724, %v723
          %v738 = vpack.c.b16 %v726, %v725
          %v739 = vpack.c.b16 %v728, %v727
          %v740 = vpack.c.b16 %v730, %v729
          %v741 = vpack.c.b16 %v732, %v731
          %v742 = vpack.c.b16 %v734, %v733
          %751 = vmatprep.subr.bf16.mxu0 0
          %752 = vmatpush1.bf16.msra.mxu0 %v735
          %753 = vmatprep.subr.bf16.mxu0 0
          %754 = vmatpush1.bf16.msra.mxu0 %v736
          %755 = vmatprep.subr.bf16.mxu0 0
          %756 = vmatpush1.bf16.msra.mxu0 %v737
          %757 = vmatprep.subr.bf16.mxu0 0
          %758 = vmatpush1.bf16.msra.mxu0 %v738
          %759 = vmatprep.subr.bf16.mxu0 0
          %760 = vmatpush1.bf16.msra.mxu0 %v739
          %761 = vmatprep.subr.bf16.mxu0 0
          %762 = vmatpush1.bf16.msra.mxu0 %v740
          %763 = vmatprep.subr.bf16.mxu0 0
          %764 = vmatpush1.bf16.msra.mxu0 %v741
          %765 = vmatprep.subr.bf16.mxu0 0
          %766 = vmatpush1.bf16.msra.mxu0 %v742
          %767 = vmatprep.subr.bf16.mxu0 0
          %768 = vmatpush1.bf16.msra.mxu0 0
          %769 = vmatprep.subr.bf16.mxu0 0
          %770 = vmatpush1.bf16.msra.mxu0 0
          %771 = vmatprep.subr.bf16.mxu0 0
          %772 = vmatpush1.bf16.msra.mxu0 0
          %773 = vmatprep.subr.bf16.mxu0 0
          %774 = vmatpush1.bf16.msra.mxu0 0
          %775 = vmatprep.subr.bf16.mxu0 0
          %776 = vmatpush1.bf16.msra.mxu0 0
          %777 = vmatprep.subr.bf16.mxu0 0
          %778 = vmatpush1.bf16.msra.mxu0 0
          %779 = vmatprep.subr.bf16.mxu0 0
          %780 = vmatpush1.bf16.msra.mxu0 0
          %781 = vmatprep.subr.bf16.mxu0 0
          %782 = vmatpush1.bf16.msra.mxu0 0
          %783 = vmatprep.mubr.bf16.mxu0 0
          %784 = vmatmul.mubr.bf16.gmra.mrb[0].mxu0 %v687
          %v785 = vpop.f32.mrb[0].mxu0
          %v786 = vadd.f32 0.0, %v785
          %v787 = vpop.f32.mrb[0].mxu0
          %v788 = vpop.f32.mrb[0].mxu0
          %v789 = vadd.f32 0.0, %v788
          %v790 = vpop.f32.mrb[0].mxu0
          %791 = vmatprep.mubr.bf16.mxu0 0
          %792 = vmatmul.mubr.bf16.gmra.mrb[0].mxu0 %v688
          %v793 = vpop.f32.mrb[0].mxu0
          %v794 = vadd.f32 0.0, %v793
          %v795 = vpop.f32.mrb[0].mxu0
          %v796 = vpop.f32.mrb[0].mxu0
          %v797 = vadd.f32 0.0, %v796
          %v798 = vpop.f32.mrb[0].mxu0
          %799 = vmatprep.mubr.bf16.mxu0 0
          %800 = vmatmul.mubr.bf16.gmra.mrb[0].mxu0 %v689
          %v801 = vpop.f32.mrb[0].mxu0
          %v802 = vadd.f32 0.0, %v801
          %v803 = vpop.f32.mrb[0].mxu0
          %v804 = vpop.f32.mrb[0].mxu0
          %v805 = vadd.f32 0.0, %v804
          %v806 = vpop.f32.mrb[0].mxu0
          %807 = vmatprep.mubr.bf16.mxu0 0
          %808 = vmatmul.mubr.bf16.gmra.mrb[0].mxu0 %v690
          %v809 = vpop.f32.mrb[0].mxu0
          %v810 = vadd.f32 0.0, %v809
          %v811 = vpop.f32.mrb[0].mxu0
          %v812 = vpop.f32.mrb[0].mxu0
          %v813 = vadd.f32 0.0, %v812
          %v814 = vpop.f32.mrb[0].mxu0
          %815 = vmatprep.mubr.bf16.mxu0 0
          %816 = vmatmul.mubr.bf16.gmra.mrb[0].mxu0 %v691
          %v817 = vpop.f32.mrb[0].mxu0
          %v818 = vadd.f32 0.0, %v817
          %v819 = vpop.f32.mrb[0].mxu0
          %v820 = vpop.f32.mrb[0].mxu0
          %v821 = vadd.f32 0.0, %v820
          %v822 = vpop.f32.mrb[0].mxu0
          %823 = vmatprep.mubr.bf16.mxu0 0
          %824 = vmatmul.mubr.bf16.gmra.mrb[0].mxu0 %v692
          %v825 = vpop.f32.mrb[0].mxu0
          %v826 = vadd.f32 0.0, %v825
          %v827 = vpop.f32.mrb[0].mxu0
          %v828 = vpop.f32.mrb[0].mxu0
          %v829 = vadd.f32 0.0, %v828
          %v830 = vpop.f32.mrb[0].mxu0
          %831 = vmatprep.mubr.bf16.mxu0 0
          %832 = vmatmul.mubr.bf16.gmra.mrb[0].mxu0 %v693
          %v833 = vpop.f32.mrb[0].mxu0
          %v834 = vadd.f32 0.0, %v833
          %v835 = vpop.f32.mrb[0].mxu0
          %v836 = vpop.f32.mrb[0].mxu0
          %v837 = vadd.f32 0.0, %v836
          %v838 = vpop.f32.mrb[0].mxu0
          %839 = vmatprep.mubr.bf16.mxu0 0
          %840 = vmatmul.mubr.bf16.gmra.mrb[0].mxu0 %v694
          %v841 = vpop.f32.mrb[0].mxu0
          %v842 = vadd.f32 0.0, %v841
          %v843 = vpop.f32.mrb[0].mxu0
          %v844 = vpop.f32.mrb[0].mxu0
          %v845 = vadd.f32 0.0, %v844
          %v846 = vpop.f32.mrb[0].mxu0
          %847 = vdwg.mxu0
          %v848 = vadd.f32 %v607, %v786
          %v849 = vadd.f32 %v608, %v789
          %v850 = vadd.f32 %v609, %v794
          %v851 = vadd.f32 %v610, %v797
          %v852 = vadd.f32 %v611, %v802
          %v853 = vadd.f32 %v612, %v805
          %v854 = vadd.f32 %v613, %v810
          %v855 = vadd.f32 %v614, %v813
          %v856 = vadd.f32 %v615, %v818
          %v857 = vadd.f32 %v616, %v821
          %v858 = vadd.f32 %v617, %v826
          %v859 = vadd.f32 %v618, %v829
          %v860 = vadd.f32 %v619, %v834
          %v861 = vadd.f32 %v620, %v837
          %v862 = vadd.f32 %v621, %v842
          %v863 = vadd.f32 %v622, %v845
          %864 = vst [vmem:[#allocation2] sm:$0xff] %v848
          %865 = vst [vmem:[#allocation2 + $0x8] sm:$0xff] %v849
          %866 = vst [vmem:[#allocation2 + $0x10] sm:$0xff] %v850
          %867 = vst [vmem:[#allocation2 + $0x18] sm:$0xff] %v851
          %868 = vst [vmem:[#allocation2 + $0x20] sm:$0xff] %v852
          %869 = vst [vmem:[#allocation2 + $0x28] sm:$0xff] %v853
          %870 = vst [vmem:[#allocation2 + $0x30] sm:$0xff] %v854
          %871 = vst [vmem:[#allocation2 + $0x38] sm:$0xff] %v855
          %872 = vst [vmem:[#allocation2 + $0x40] sm:$0xff] %v856
          %873 = vst [vmem:[#allocation2 + $0x48] sm:$0xff] %v857
          %874 = vst [vmem:[#allocation2 + $0x50] sm:$0xff] %v858
          %875 = vst [vmem:[#allocation2 + $0x58] sm:$0xff] %v859
          %876 = vst [vmem:[#allocation2 + $0x60] sm:$0xff] %v860
          %877 = vst [vmem:[#allocation2 + $0x68] sm:$0xff] %v861
          %878 = vst [vmem:[#allocation2 + $0x70] sm:$0xff] %v862
          %879 = vst [vmem:[#allocation2 + $0x78] sm:$0xff] %v863
        $region92: #{tpu_custom_call.1} parent=55 // pred_fallthru
          _
        %p880 = scmp.eq.s32.totalorder %s51, 1
        // Predicated region
        $region93: #{tpu_custom_call.1} parent=55 // pred_check
          %p881 = pneg %p880
        $region94: #{tpu_custom_call.1} parent=55 // pred_check_branch
          %883 = sbr.rel (%p881) target = $region96
        $region95: #{tpu_custom_call.1} parent=55 // pred_region
          %v884 = vld [vmem:[#allocation2] sm:$0xff]
          %v885 = vld [vmem:[#allocation2 + $0x8] sm:$0xff]
          %v886 = vld [vmem:[#allocation2 + $0x10] sm:$0xff]
          %v887 = vld [vmem:[#allocation2 + $0x18] sm:$0xff]
          %v888 = vld [vmem:[#allocation2 + $0x20] sm:$0xff]
          %v889 = vld [vmem:[#allocation2 + $0x28] sm:$0xff]
          %v890 = vld [vmem:[#allocation2 + $0x30] sm:$0xff]
          %v891 = vld [vmem:[#allocation2 + $0x38] sm:$0xff]
          %v892 = vld [vmem:[#allocation2 + $0x40] sm:$0xff]
          %v893 = vld [vmem:[#allocation2 + $0x48] sm:$0xff]
          %v894 = vld [vmem:[#allocation2 + $0x50] sm:$0xff]
          %v895 = vld [vmem:[#allocation2 + $0x58] sm:$0xff]
          %v896 = vld [vmem:[#allocation2 + $0x60] sm:$0xff]
          %v897 = vld [vmem:[#allocation2 + $0x68] sm:$0xff]
          %v898 = vld [vmem:[#allocation2 + $0x70] sm:$0xff]
          %v899 = vld [vmem:[#allocation2 + $0x78] sm:$0xff]
          %v900 = vpack.c.bf16 %v885, %v884
          %v901 = vpack.c.bf16 %v887, %v886
          %v902 = vpack.c.bf16 %v889, %v888
          %v903 = vpack.c.bf16 %v891, %v890
          %v904 = vpack.c.bf16 %v893, %v892
          %v905 = vpack.c.bf16 %v895, %v894
          %v906 = vpack.c.bf16 %v897, %v896
          %v907 = vpack.c.bf16 %v899, %v898
          %v908 = vld [vmem:[#allocation12] sm:$0xff]
          %v909 = vld [vmem:[#allocation12 + $0x8] sm:$0xff]
          %v910 = vld [vmem:[#allocation12 + $0x10] sm:$0xff]
          %v911 = vld [vmem:[#allocation12 + $0x18] sm:$0xff]
          %v912 = vld [vmem:[#allocation12 + $0x20] sm:$0xff]
          %v913 = vld [vmem:[#allocation12 + $0x28] sm:$0xff]
          %v914 = vld [vmem:[#allocation12 + $0x30] sm:$0xff]
          %v915 = vld [vmem:[#allocation12 + $0x38] sm:$0xff]
          %v916 = vld [vmem:[#allocation12 + $0x40] sm:$0xff]
          %v917 = vld [vmem:[#allocation12 + $0x48] sm:$0xff]
          %v918 = vld [vmem:[#allocation12 + $0x50] sm:$0xff]
          %v919 = vld [vmem:[#allocation12 + $0x58] sm:$0xff]
          %v920 = vld [vmem:[#allocation12 + $0x60] sm:$0xff]
          %v921 = vld [vmem:[#allocation12 + $0x68] sm:$0xff]
          %v922 = vld [vmem:[#allocation12 + $0x70] sm:$0xff]
          %v923 = vld [vmem:[#allocation12 + $0x78] sm:$0xff]
          %v924 = vld [vmem:[%s500] sm:$0xf]
          %v925 = vld [vmem:[%s500 + $0x4] sm:$0xf]
          %v926 = vld [vmem:[%s500 + $0x8] sm:$0xf]
          %v927 = vld [vmem:[%s500 + $0xc] sm:$0xf]
          %v928 = vld [vmem:[%s500 + $0x10] sm:$0xf]
          %v929 = vld [vmem:[%s500 + $0x14] sm:$0xf]
          %v930 = vld [vmem:[%s500 + $0x18] sm:$0xf]
          %v931 = vld [vmem:[%s500 + $0x1c] sm:$0xf]
          %v932 = vld [vmem:[%s500 + $0x20] sm:$0xf]
          %v933 = vld [vmem:[%s500 + $0x24] sm:$0xf]
          %v934 = vld [vmem:[%s500 + $0x28] sm:$0xf]
          %v935 = vld [vmem:[%s500 + $0x2c] sm:$0xf]
          %v936 = vld [vmem:[%s500 + $0x30] sm:$0xf]
          %v937 = vld [vmem:[%s500 + $0x34] sm:$0xf]
          %v938 = vld [vmem:[%s500 + $0x38] sm:$0xf]
          %v939 = vld [vmem:[%s500 + $0x3c] sm:$0xf]
          %v940 = vld [vmem:[#allocation14] sm:$0xff]
          %v941 = vld [vmem:[#allocation14 + $0x8] sm:$0xff]
          %v942 = vld [vmem:[#allocation14 + $0x10] sm:$0xff]
          %v943 = vld [vmem:[#allocation14 + $0x18] sm:$0xff]
          %v944 = vld [vmem:[#allocation14 + $0x20] sm:$0xff]
          %v945 = vld [vmem:[#allocation14 + $0x28] sm:$0xff]
          %v946 = vld [vmem:[#allocation14 + $0x30] sm:$0xff]
          %v947 = vld [vmem:[#allocation14 + $0x38] sm:$0xff]
          %v948 = vld [vmem:[#allocation14 + $0x40] sm:$0xff]
          %v949 = vld [vmem:[#allocation14 + $0x48] sm:$0xff]
          %v950 = vld [vmem:[#allocation14 + $0x50] sm:$0xff]
          %v951 = vld [vmem:[#allocation14 + $0x58] sm:$0xff]
          %v952 = vld [vmem:[#allocation14 + $0x60] sm:$0xff]
          %v953 = vld [vmem:[#allocation14 + $0x68] sm:$0xff]
          %v954 = vld [vmem:[#allocation14 + $0x70] sm:$0xff]
          %v955 = vld [vmem:[#allocation14 + $0x78] sm:$0xff]
          %v972 = vunpack.c.l.b16 %v924
          %v973 = vunpack.c.l.b16 %v925
          %v974 = vunpack.c.l.b16 %v926
          %v975 = vunpack.c.l.b16 %v927
          %v976 = vunpack.c.l.b16 %v928
          %v977 = vunpack.c.l.b16 %v929
          %v978 = vunpack.c.l.b16 %v930
          %v979 = vunpack.c.l.b16 %v931
          %v980 = vunpack.c.l.b16 %v932
          %v981 = vunpack.c.l.b16 %v933
          %v982 = vunpack.c.l.b16 %v934
          %v983 = vunpack.c.l.b16 %v935
          %v984 = vunpack.c.l.b16 %v936
          %v985 = vunpack.c.l.b16 %v937
          %v986 = vunpack.c.l.b16 %v938
          %v987 = vunpack.c.l.b16 %v939
          %v988 = vpack.c.b16 %v973, %v972
          %v989 = vpack.c.b16 %v975, %v974
          %v990 = vpack.c.b16 %v977, %v976
          %v991 = vpack.c.b16 %v979, %v978
          %v992 = vpack.c.b16 %v981, %v980
          %v993 = vpack.c.b16 %v983, %v982
          %v994 = vpack.c.b16 %v985, %v984
          %v995 = vpack.c.b16 %v987, %v986
          %v1020 = vunpack.c.l.b16 %v940
          %v1021 = vunpack.c.h.b16 %v940
          %v1022 = vunpack.c.l.b16 %v941
          %v1023 = vunpack.c.h.b16 %v941
          %v1024 = vunpack.c.l.b16 %v942
          %v1025 = vunpack.c.h.b16 %v942
          %v1026 = vunpack.c.l.b16 %v943
          %v1027 = vunpack.c.h.b16 %v943
          %v1028 = vunpack.c.l.b16 %v944
          %v1029 = vunpack.c.h.b16 %v944
          %v1030 = vunpack.c.l.b16 %v945
          %v1031 = vunpack.c.h.b16 %v945
          %v1032 = vunpack.c.l.b16 %v946
          %v1033 = vunpack.c.h.b16 %v946
          %v1034 = vunpack.c.l.b16 %v947
          %v1035 = vunpack.c.h.b16 %v947
          %v1036 = vunpack.c.l.b16 %v948
          %v1037 = vunpack.c.h.b16 %v948
          %v1038 = vunpack.c.l.b16 %v949
          %v1039 = vunpack.c.h.b16 %v949
          %v1040 = vunpack.c.l.b16 %v950
          %v1041 = vunpack.c.h.b16 %v950
          %v1042 = vunpack.c.l.b16 %v951
          %v1043 = vunpack.c.h.b16 %v951
          %v1044 = vunpack.c.l.b16 %v952
          %v1045 = vunpack.c.h.b16 %v952
          %v1046 = vunpack.c.l.b16 %v953
          %v1047 = vunpack.c.h.b16 %v953
          %v1048 = vunpack.c.l.b16 %v954
          %v1049 = vunpack.c.h.b16 %v954
          %v1050 = vunpack.c.l.b16 %v955
          %v1051 = vunpack.c.h.b16 %v955
          %v1052 = vpack.c.b16 %v1022, %v1020
          %v1053 = vpack.c.b16 %v1023, %v1021
          %v1054 = vpack.c.b16 %v1026, %v1024
          %v1055 = vpack.c.b16 %v1027, %v1025
          %v1056 = vpack.c.b16 %v1030, %v1028
          %v1057 = vpack.c.b16 %v1031, %v1029
          %v1058 = vpack.c.b16 %v1034, %v1032
          %v1059 = vpack.c.b16 %v1035, %v1033
          %v1060 = vpack.c.b16 %v1038, %v1036
          %v1061 = vpack.c.b16 %v1039, %v1037
          %v1062 = vpack.c.b16 %v1042, %v1040
          %v1063 = vpack.c.b16 %v1043, %v1041
          %v1064 = vpack.c.b16 %v1046, %v1044
          %v1065 = vpack.c.b16 %v1047, %v1045
          %v1066 = vpack.c.b16 %v1050, %v1048
          %v1067 = vpack.c.b16 %v1051, %v1049
          %1084 = vmatprep.subr.bf16.mxu0 %v1053
          %1085 = vmatpush1.bf16.msra.mxu0 %v1052
          %1086 = vmatprep.subr.bf16.mxu0 %v1055
          %1087 = vmatpush1.bf16.msra.mxu0 %v1054
          %1088 = vmatprep.subr.bf16.mxu0 %v1057
          %1089 = vmatpush1.bf16.msra.mxu0 %v1056
          %1090 = vmatprep.subr.bf16.mxu0 %v1059
          %1091 = vmatpush1.bf16.msra.mxu0 %v1058
          %1092 = vmatprep.subr.bf16.mxu0 %v1061
          %1093 = vmatpush1.bf16.msra.mxu0 %v1060
          %1094 = vmatprep.subr.bf16.mxu0 %v1063
          %1095 = vmatpush1.bf16.msra.mxu0 %v1062
          %1096 = vmatprep.subr.bf16.mxu0 %v1065
          %1097 = vmatpush1.bf16.msra.mxu0 %v1064
          %1098 = vmatprep.subr.bf16.mxu0 %v1067
          %1099 = vmatpush1.bf16.msra.mxu0 %v1066
          %1100 = vmatprep.subr.bf16.mxu0 0
          %1101 = vmatpush1.bf16.msra.mxu0 0
          %1102 = vmatprep.subr.bf16.mxu0 0
          %1103 = vmatpush1.bf16.msra.mxu0 0
          %1104 = vmatprep.subr.bf16.mxu0 0
          %1105 = vmatpush1.bf16.msra.mxu0 0
          %1106 = vmatprep.subr.bf16.mxu0 0
          %1107 = vmatpush1.bf16.msra.mxu0 0
          %1108 = vmatprep.subr.bf16.mxu0 0
          %1109 = vmatpush1.bf16.msra.mxu0 0
          %1110 = vmatprep.subr.bf16.mxu0 0
          %1111 = vmatpush1.bf16.msra.mxu0 0
          %1112 = vmatprep.subr.bf16.mxu0 0
          %1113 = vmatpush1.bf16.msra.mxu0 0
          %1114 = vmatprep.subr.bf16.mxu0 0
          %1115 = vmatpush1.bf16.msra.mxu0 0
          %1116 = vmatprep.mubr.bf16.mxu0 0
          %1117 = vmatmul.mubr.bf16.gmra.mrb[0].mxu0 %v988
          %v1118 = vpop.f32.mrb[0].mxu0
          %v1119 = vadd.f32 0.0, %v1118
          %v1120 = vpop.f32.mrb[0].mxu0
          %v1121 = vadd.f32 0.0, %v1120
          %v1122 = vpop.f32.mrb[0].mxu0
          %v1123 = vadd.f32 0.0, %v1122
          %v1124 = vpop.f32.mrb[0].mxu0
          %v1125 = vadd.f32 0.0, %v1124
          %1126 = vmatprep.mubr.bf16.mxu0 0
          %1127 = vmatmul.mubr.bf16.gmra.mrb[0].mxu0 %v989
          %v1128 = vpop.f32.mrb[0].mxu0
          %v1129 = vadd.f32 0.0, %v1128
          %v1130 = vpop.f32.mrb[0].mxu0
          %v1131 = vadd.f32 0.0, %v1130
          %v1132 = vpop.f32.mrb[0].mxu0
          %v1133 = vadd.f32 0.0, %v1132
          %v1134 = vpop.f32.mrb[0].mxu0
          %v1135 = vadd.f32 0.0, %v1134
          %1136 = vmatprep.mubr.bf16.mxu0 0
          %1137 = vmatmul.mubr.bf16.gmra.mrb[0].mxu0 %v990
          %v1138 = vpop.f32.mrb[0].mxu0
          %v1139 = vadd.f32 0.0, %v1138
          %v1140 = vpop.f32.mrb[0].mxu0
          %v1141 = vadd.f32 0.0, %v1140
          %v1142 = vpop.f32.mrb[0].mxu0
          %v1143 = vadd.f32 0.0, %v1142
          %v1144 = vpop.f32.mrb[0].mxu0
          %v1145 = vadd.f32 0.0, %v1144
          %1146 = vmatprep.mubr.bf16.mxu0 0
          %1147 = vmatmul.mubr.bf16.gmra.mrb[0].mxu0 %v991
          %v1148 = vpop.f32.mrb[0].mxu0
          %v1149 = vadd.f32 0.0, %v1148
          %v1150 = vpop.f32.mrb[0].mxu0
          %v1151 = vadd.f32 0.0, %v1150
          %v1152 = vpop.f32.mrb[0].mxu0
          %v1153 = vadd.f32 0.0, %v1152
          %v1154 = vpop.f32.mrb[0].mxu0
          %v1155 = vadd.f32 0.0, %v1154
          %1156 = vmatprep.mubr.bf16.mxu0 0
          %1157 = vmatmul.mubr.bf16.gmra.mrb[0].mxu0 %v992
          %v1158 = vpop.f32.mrb[0].mxu0
          %v1159 = vadd.f32 0.0, %v1158
          %v1160 = vpop.f32.mrb[0].mxu0
          %v1161 = vadd.f32 0.0, %v1160
          %v1162 = vpop.f32.mrb[0].mxu0
          %v1163 = vadd.f32 0.0, %v1162
          %v1164 = vpop.f32.mrb[0].mxu0
          %v1165 = vadd.f32 0.0, %v1164
          %1166 = vmatprep.mubr.bf16.mxu0 0
          %1167 = vmatmul.mubr.bf16.gmra.mrb[0].mxu0 %v993
          %v1168 = vpop.f32.mrb[0].mxu0
          %v1169 = vadd.f32 0.0, %v1168
          %v1170 = vpop.f32.mrb[0].mxu0
          %v1171 = vadd.f32 0.0, %v1170
          %v1172 = vpop.f32.mrb[0].mxu0
          %v1173 = vadd.f32 0.0, %v1172
          %v1174 = vpop.f32.mrb[0].mxu0
          %v1175 = vadd.f32 0.0, %v1174
          %1176 = vmatprep.mubr.bf16.mxu0 0
          %1177 = vmatmul.mubr.bf16.gmra.mrb[0].mxu0 %v994
          %v1178 = vpop.f32.mrb[0].mxu0
          %v1179 = vadd.f32 0.0, %v1178
          %v1180 = vpop.f32.mrb[0].mxu0
          %v1181 = vadd.f32 0.0, %v1180
          %v1182 = vpop.f32.mrb[0].mxu0
          %v1183 = vadd.f32 0.0, %v1182
          %v1184 = vpop.f32.mrb[0].mxu0
          %v1185 = vadd.f32 0.0, %v1184
          %1186 = vmatprep.mubr.bf16.mxu0 0
          %1187 = vmatmul.mubr.bf16.gmra.mrb[0].mxu0 %v995
          %v1188 = vpop.f32.mrb[0].mxu0
          %v1189 = vadd.f32 0.0, %v1188
          %v1190 = vpop.f32.mrb[0].mxu0
          %v1191 = vadd.f32 0.0, %v1190
          %v1192 = vpop.f32.mrb[0].mxu0
          %v1193 = vadd.f32 0.0, %v1192
          %v1194 = vpop.f32.mrb[0].mxu0
          %v1195 = vadd.f32 0.0, %v1194
          %1196 = vdwg.mxu0
          %v1213 = vunpack.c.l.b16 %v908
          %v1214 = vunpack.c.h.b16 %v908
          %v1215 = vunpack.c.l.b16 %v909
          %v1216 = vunpack.c.h.b16 %v909
          %v1217 = vunpack.c.l.b16 %v910
          %v1218 = vunpack.c.h.b16 %v910
          %v1219 = vunpack.c.l.b16 %v911
          %v1220 = vunpack.c.h.b16 %v911
          %v1221 = vunpack.c.l.b16 %v912
          %v1222 = vunpack.c.h.b16 %v912
          %v1223 = vunpack.c.l.b16 %v913
          %v1224 = vunpack.c.h.b16 %v913
          %v1225 = vunpack.c.l.b16 %v914
          %v1226 = vunpack.c.h.b16 %v914
          %v1227 = vunpack.c.l.b16 %v915
          %v1228 = vunpack.c.h.b16 %v915
          %v1229 = vunpack.c.l.b16 %v916
          %v1230 = vunpack.c.h.b16 %v916
          %v1231 = vunpack.c.l.b16 %v917
          %v1232 = vunpack.c.h.b16 %v917
          %v1233 = vunpack.c.l.b16 %v918
          %v1234 = vunpack.c.h.b16 %v918
          %v1235 = vunpack.c.l.b16 %v919
          %v1236 = vunpack.c.h.b16 %v919
          %v1237 = vunpack.c.l.b16 %v920
          %v1238 = vunpack.c.h.b16 %v920
          %v1239 = vunpack.c.l.b16 %v921
          %v1240 = vunpack.c.h.b16 %v921
          %v1241 = vunpack.c.l.b16 %v922
          %v1242 = vunpack.c.h.b16 %v922
          %v1243 = vunpack.c.l.b16 %v923
          %v1244 = vunpack.c.h.b16 %v923
          %v1245 = vpack.c.b16 %v1215, %v1213
          %v1246 = vpack.c.b16 %v1216, %v1214
          %v1247 = vpack.c.b16 %v1219, %v1217
          %v1248 = vpack.c.b16 %v1220, %v1218
          %v1249 = vpack.c.b16 %v1223, %v1221
          %v1250 = vpack.c.b16 %v1224, %v1222
          %v1251 = vpack.c.b16 %v1227, %v1225
          %v1252 = vpack.c.b16 %v1228, %v1226
          %v1253 = vpack.c.b16 %v1231, %v1229
          %v1254 = vpack.c.b16 %v1232, %v1230
          %v1255 = vpack.c.b16 %v1235, %v1233
          %v1256 = vpack.c.b16 %v1236, %v1234
          %v1257 = vpack.c.b16 %v1239, %v1237
          %v1258 = vpack.c.b16 %v1240, %v1238
          %v1259 = vpack.c.b16 %v1243, %v1241
          %v1260 = vpack.c.b16 %v1244, %v1242
          %1277 = vmatprep.subr.bf16.mxu0 %v1246
          %1278 = vmatpush1.bf16.msra.mxu0 %v1245
          %1279 = vmatprep.subr.bf16.mxu0 %v1248
          %1280 = vmatpush1.bf16.msra.mxu0 %v1247
          %1281 = vmatprep.subr.bf16.mxu0 %v1250
          %1282 = vmatpush1.bf16.msra.mxu0 %v1249
          %1283 = vmatprep.subr.bf16.mxu0 %v1252
          %1284 = vmatpush1.bf16.msra.mxu0 %v1251
          %1285 = vmatprep.subr.bf16.mxu0 %v1254
          %1286 = vmatpush1.bf16.msra.mxu0 %v1253
          %1287 = vmatprep.subr.bf16.mxu0 %v1256
          %1288 = vmatpush1.bf16.msra.mxu0 %v1255
          %1289 = vmatprep.subr.bf16.mxu0 %v1258
          %1290 = vmatpush1.bf16.msra.mxu0 %v1257
          %1291 = vmatprep.subr.bf16.mxu0 %v1260
          %1292 = vmatpush1.bf16.msra.mxu0 %v1259
          %1293 = vmatprep.subr.bf16.mxu0 0
          %1294 = vmatpush1.bf16.msra.mxu0 0
          %1295 = vmatprep.subr.bf16.mxu0 0
          %1296 = vmatpush1.bf16.msra.mxu0 0
          %1297 = vmatprep.subr.bf16.mxu0 0
          %1298 = vmatpush1.bf16.msra.mxu0 0
          %1299 = vmatprep.subr.bf16.mxu0 0
          %1300 = vmatpush1.bf16.msra.mxu0 0
          %1301 = vmatprep.subr.bf16.mxu0 0
          %1302 = vmatpush1.bf16.msra.mxu0 0
          %1303 = vmatprep.subr.bf16.mxu0 0
          %1304 = vmatpush1.bf16.msra.mxu0 0
          %1305 = vmatprep.subr.bf16.mxu0 0
          %1306 = vmatpush1.bf16.msra.mxu0 0
          %1307 = vmatprep.subr.bf16.mxu0 0
          %1308 = vmatpush1.bf16.msra.mxu0 0
          %1309 = vmatprep.mubr.bf16.mxu0 0
          %1310 = vmatmul.mubr.bf16.gmra.mrb[0].mxu0 %v900
          %v1311 = vpop.f32.mrb[0].mxu0
          %v1312 = vadd.f32 %v1119, %v1311
          %v1313 = vpop.f32.mrb[0].mxu0
          %v1314 = vadd.f32 %v1121, %v1313
          %v1315 = vpop.f32.mrb[0].mxu0
          %v1316 = vadd.f32 %v1123, %v1315
          %v1317 = vpop.f32.mrb[0].mxu0
          %v1318 = vadd.f32 %v1125, %v1317
          %1319 = vmatprep.mubr.bf16.mxu0 0
          %1320 = vmatmul.mubr.bf16.gmra.mrb[0].mxu0 %v901
          %v1321 = vpop.f32.mrb[0].mxu0
          %v1322 = vadd.f32 %v1129, %v1321
          %v1323 = vpop.f32.mrb[0].mxu0
          %v1324 = vadd.f32 %v1131, %v1323
          %v1325 = vpop.f32.mrb[0].mxu0
          %v1326 = vadd.f32 %v1133, %v1325
          %v1327 = vpop.f32.mrb[0].mxu0
          %v1328 = vadd.f32 %v1135, %v1327
          %1329 = vmatprep.mubr.bf16.mxu0 0
          %1330 = vmatmul.mubr.bf16.gmra.mrb[0].mxu0 %v902
          %v1331 = vpop.f32.mrb[0].mxu0
          %v1332 = vadd.f32 %v1139, %v1331
          %v1333 = vpop.f32.mrb[0].mxu0
          %v1334 = vadd.f32 %v1141, %v1333
          %v1335 = vpop.f32.mrb[0].mxu0
          %v1336 = vadd.f32 %v1143, %v1335
          %v1337 = vpop.f32.mrb[0].mxu0
          %v1338 = vadd.f32 %v1145, %v1337
          %1339 = vmatprep.mubr.bf16.mxu0 0
          %1340 = vmatmul.mubr.bf16.gmra.mrb[0].mxu0 %v903
          %v1341 = vpop.f32.mrb[0].mxu0
          %v1342 = vadd.f32 %v1149, %v1341
          %v1343 = vpop.f32.mrb[0].mxu0
          %v1344 = vadd.f32 %v1151, %v1343
          %v1345 = vpop.f32.mrb[0].mxu0
          %v1346 = vadd.f32 %v1153, %v1345
          %v1347 = vpop.f32.mrb[0].mxu0
          %v1348 = vadd.f32 %v1155, %v1347
          %1349 = vmatprep.mubr.bf16.mxu0 0
          %1350 = vmatmul.mubr.bf16.gmra.mrb[0].mxu0 %v904
          %v1351 = vpop.f32.mrb[0].mxu0
          %v1352 = vadd.f32 %v1159, %v1351
          %v1353 = vpop.f32.mrb[0].mxu0
          %v1354 = vadd.f32 %v1161, %v1353
          %v1355 = vpop.f32.mrb[0].mxu0
          %v1356 = vadd.f32 %v1163, %v1355
          %v1357 = vpop.f32.mrb[0].mxu0
          %v1358 = vadd.f32 %v1165, %v1357
          %1359 = vmatprep.mubr.bf16.mxu0 0
          %1360 = vmatmul.mubr.bf16.gmra.mrb[0].mxu0 %v905
          %v1361 = vpop.f32.mrb[0].mxu0
          %v1362 = vadd.f32 %v1169, %v1361
          %v1363 = vpop.f32.mrb[0].mxu0
          %v1364 = vadd.f32 %v1171, %v1363
          %v1365 = vpop.f32.mrb[0].mxu0
          %v1366 = vadd.f32 %v1173, %v1365
          %v1367 = vpop.f32.mrb[0].mxu0
          %v1368 = vadd.f32 %v1175, %v1367
          %1369 = vmatprep.mubr.bf16.mxu0 0
          %1370 = vmatmul.mubr.bf16.gmra.mrb[0].mxu0 %v906
          %v1371 = vpop.f32.mrb[0].mxu0
          %v1372 = vadd.f32 %v1179, %v1371
          %v1373 = vpop.f32.mrb[0].mxu0
          %v1374 = vadd.f32 %v1181, %v1373
          %v1375 = vpop.f32.mrb[0].mxu0
          %v1376 = vadd.f32 %v1183, %v1375
          %v1377 = vpop.f32.mrb[0].mxu0
          %v1378 = vadd.f32 %v1185, %v1377
          %1379 = vmatprep.mubr.bf16.mxu0 0
          %1380 = vmatmul.mubr.bf16.gmra.mrb[0].mxu0 %v907
          %v1381 = vpop.f32.mrb[0].mxu0
          %v1382 = vadd.f32 %v1189, %v1381
          %v1383 = vpop.f32.mrb[0].mxu0
          %v1384 = vadd.f32 %v1191, %v1383
          %v1385 = vpop.f32.mrb[0].mxu0
          %v1386 = vadd.f32 %v1193, %v1385
          %v1387 = vpop.f32.mrb[0].mxu0
          %v1388 = vadd.f32 %v1195, %v1387
          %1389 = vdwg.mxu0
          %v1390 = vld [vmem:[%s7] sm:$0x3]
          %v1392 = vlaneseq
          %v1393 = vshrl.u32 %v1392, 7
          %v1394 = vsub.s32 0, %v1393
          %v1395 = vrot.slane %v1390, %v1394
          %v1396 = vlaneseq
          %v1397 = vshrl.u32 %v1396, 7
          %v1398 = vsub.s32 1, %v1397
          %v1399 = vrot.slane %v1390, %v1398
          %v1402 = vadd.f32 %v1312, %v1395
          %v1403 = vadd.f32 %v1314, %v1399
          %v1404 = vadd.f32 %v1316, %v1395
          %v1405 = vadd.f32 %v1318, %v1399
          %v1406 = vadd.f32 %v1322, %v1395
          %v1407 = vadd.f32 %v1324, %v1399
          %v1408 = vadd.f32 %v1326, %v1395
          %v1409 = vadd.f32 %v1328, %v1399
          %v1410 = vadd.f32 %v1332, %v1395
          %v1411 = vadd.f32 %v1334, %v1399
          %v1412 = vadd.f32 %v1336, %v1395
          %v1413 = vadd.f32 %v1338, %v1399
          %v1414 = vadd.f32 %v1342, %v1395
          %v1415 = vadd.f32 %v1344, %v1399
          %v1416 = vadd.f32 %v1346, %v1395
          %v1417 = vadd.f32 %v1348, %v1399
          %v1418 = vadd.f32 %v1352, %v1395
          %v1419 = vadd.f32 %v1354, %v1399
          %v1420 = vadd.f32 %v1356, %v1395
          %v1421 = vadd.f32 %v1358, %v1399
          %v1422 = vadd.f32 %v1362, %v1395
          %v1423 = vadd.f32 %v1364, %v1399
          %v1424 = vadd.f32 %v1366, %v1395
          %v1425 = vadd.f32 %v1368, %v1399
          %v1426 = vadd.f32 %v1372, %v1395
          %v1427 = vadd.f32 %v1374, %v1399
          %v1428 = vadd.f32 %v1376, %v1395
          %v1429 = vadd.f32 %v1378, %v1399
          %v1430 = vadd.f32 %v1382, %v1395
          %v1431 = vadd.f32 %v1384, %v1399
          %v1432 = vadd.f32 %v1386, %v1395
          %v1433 = vadd.f32 %v1388, %v1399
          %v1434 = vmax.f32 %v1402, 0.0
          %v1435 = vmax.f32 %v1403, 0.0
          %v1436 = vmax.f32 %v1404, 0.0
          %v1437 = vmax.f32 %v1405, 0.0
          %v1438 = vmax.f32 %v1406, 0.0
          %v1439 = vmax.f32 %v1407, 0.0
          %v1440 = vmax.f32 %v1408, 0.0
          %v1441 = vmax.f32 %v1409, 0.0
          %v1442 = vmax.f32 %v1410, 0.0
          %v1443 = vmax.f32 %v1411, 0.0
          %v1444 = vmax.f32 %v1412, 0.0
          %v1445 = vmax.f32 %v1413, 0.0
          %v1446 = vmax.f32 %v1414, 0.0
          %v1447 = vmax.f32 %v1415, 0.0
          %v1448 = vmax.f32 %v1416, 0.0
          %v1449 = vmax.f32 %v1417, 0.0
          %v1450 = vmax.f32 %v1418, 0.0
          %v1451 = vmax.f32 %v1419, 0.0
          %v1452 = vmax.f32 %v1420, 0.0
          %v1453 = vmax.f32 %v1421, 0.0
          %v1454 = vmax.f32 %v1422, 0.0
          %v1455 = vmax.f32 %v1423, 0.0
          %v1456 = vmax.f32 %v1424, 0.0
          %v1457 = vmax.f32 %v1425, 0.0
          %v1458 = vmax.f32 %v1426, 0.0
          %v1459 = vmax.f32 %v1427, 0.0
          %v1460 = vmax.f32 %v1428, 0.0
          %v1461 = vmax.f32 %v1429, 0.0
          %v1462 = vmax.f32 %v1430, 0.0
          %v1463 = vmax.f32 %v1431, 0.0
          %v1464 = vmax.f32 %v1432, 0.0
          %v1465 = vmax.f32 %v1433, 0.0
          %v1466 = vpack.c.bf16 %v1436, %v1434
          %v1467 = vpack.c.bf16 %v1437, %v1435
          %v1468 = vpack.c.bf16 %v1440, %v1438
          %v1469 = vpack.c.bf16 %v1441, %v1439
          %v1470 = vpack.c.bf16 %v1444, %v1442
          %v1471 = vpack.c.bf16 %v1445, %v1443
          %v1472 = vpack.c.bf16 %v1448, %v1446
          %v1473 = vpack.c.bf16 %v1449, %v1447
          %v1474 = vpack.c.bf16 %v1452, %v1450
          %v1475 = vpack.c.bf16 %v1453, %v1451
          %v1476 = vpack.c.bf16 %v1456, %v1454
          %v1477 = vpack.c.bf16 %v1457, %v1455
          %v1478 = vpack.c.bf16 %v1460, %v1458
          %v1479 = vpack.c.bf16 %v1461, %v1459
          %v1480 = vpack.c.bf16 %v1464, %v1462
          %v1481 = vpack.c.bf16 %v1465, %v1463
          %v1482 = vld [vmem:[#allocation15] sm:$0xf]
          %v1483 = vld [vmem:[#allocation15 + $0x4] sm:$0xf]
          %v1484 = vld [vmem:[#allocation15 + $0x8] sm:$0xf]
          %v1485 = vld [vmem:[#allocation15 + $0xc] sm:$0xf]
          %v1486 = vld [vmem:[#allocation15 + $0x10] sm:$0xf]
          %v1487 = vld [vmem:[#allocation15 + $0x14] sm:$0xf]
          %v1488 = vld [vmem:[#allocation15 + $0x18] sm:$0xf]
          %v1489 = vld [vmem:[#allocation15 + $0x1c] sm:$0xf]
          %v1490 = vld [vmem:[#allocation15 + $0x20] sm:$0xf]
          %v1491 = vld [vmem:[#allocation15 + $0x24] sm:$0xf]
          %v1492 = vld [vmem:[#allocation15 + $0x28] sm:$0xf]
          %v1493 = vld [vmem:[#allocation15 + $0x2c] sm:$0xf]
          %v1494 = vld [vmem:[#allocation15 + $0x30] sm:$0xf]
          %v1495 = vld [vmem:[#allocation15 + $0x34] sm:$0xf]
          %v1496 = vld [vmem:[#allocation15 + $0x38] sm:$0xf]
          %v1497 = vld [vmem:[#allocation15 + $0x3c] sm:$0xf]
          %v1498 = vld [vmem:[#allocation15 + $0x40] sm:$0xf]
          %v1499 = vld [vmem:[#allocation15 + $0x44] sm:$0xf]
          %v1500 = vld [vmem:[#allocation15 + $0x48] sm:$0xf]
          %v1501 = vld [vmem:[#allocation15 + $0x4c] sm:$0xf]
          %v1502 = vld [vmem:[#allocation15 + $0x50] sm:$0xf]
          %v1503 = vld [vmem:[#allocation15 + $0x54] sm:$0xf]
          %v1504 = vld [vmem:[#allocation15 + $0x58] sm:$0xf]
          %v1505 = vld [vmem:[#allocation15 + $0x5c] sm:$0xf]
          %v1506 = vld [vmem:[#allocation15 + $0x60] sm:$0xf]
          %v1507 = vld [vmem:[#allocation15 + $0x64] sm:$0xf]
          %v1508 = vld [vmem:[#allocation15 + $0x68] sm:$0xf]
          %v1509 = vld [vmem:[#allocation15 + $0x6c] sm:$0xf]
          %v1510 = vld [vmem:[#allocation15 + $0x70] sm:$0xf]
          %v1511 = vld [vmem:[#allocation15 + $0x74] sm:$0xf]
          %v1512 = vld [vmem:[#allocation15 + $0x78] sm:$0xf]
          %v1513 = vld [vmem:[#allocation15 + $0x7c] sm:$0xf]
          %v1546 = vunpack.c.l.b16 %v1482
          %v1547 = vunpack.c.l.b16 %v1483
          %v1548 = vunpack.c.l.b16 %v1484
          %v1549 = vunpack.c.l.b16 %v1485
          %v1550 = vunpack.c.l.b16 %v1486
          %v1551 = vunpack.c.l.b16 %v1487
          %v1552 = vunpack.c.l.b16 %v1488
          %v1553 = vunpack.c.l.b16 %v1489
          %v1554 = vunpack.c.l.b16 %v1490
          %v1555 = vunpack.c.l.b16 %v1491
          %v1556 = vunpack.c.l.b16 %v1492
          %v1557 = vunpack.c.l.b16 %v1493
          %v1558 = vunpack.c.l.b16 %v1494
          %v1559 = vunpack.c.l.b16 %v1495
          %v1560 = vunpack.c.l.b16 %v1496
          %v1561 = vunpack.c.l.b16 %v1497
          %v1562 = vunpack.c.l.b16 %v1498
          %v1563 = vunpack.c.l.b16 %v1499
          %v1564 = vunpack.c.l.b16 %v1500
          %v1565 = vunpack.c.l.b16 %v1501
          %v1566 = vunpack.c.l.b16 %v1502
          %v1567 = vunpack.c.l.b16 %v1503
          %v1568 = vunpack.c.l.b16 %v1504
          %v1569 = vunpack.c.l.b16 %v1505
          %v1570 = vunpack.c.l.b16 %v1506
          %v1571 = vunpack.c.l.b16 %v1507
          %v1572 = vunpack.c.l.b16 %v1508
          %v1573 = vunpack.c.l.b16 %v1509
          %v1574 = vunpack.c.l.b16 %v1510
          %v1575 = vunpack.c.l.b16 %v1511
          %v1576 = vunpack.c.l.b16 %v1512
          %v1577 = vunpack.c.l.b16 %v1513
          %v1578 = vpack.c.b16 %v1547, %v1546
          %v1579 = vpack.c.b16 %v1549, %v1548
          %v1580 = vpack.c.b16 %v1551, %v1550
          %v1581 = vpack.c.b16 %v1553, %v1552
          %v1582 = vpack.c.b16 %v1555, %v1554
          %v1583 = vpack.c.b16 %v1557, %v1556
          %v1584 = vpack.c.b16 %v1559, %v1558
          %v1585 = vpack.c.b16 %v1561, %v1560
          %v1586 = vpack.c.b16 %v1563, %v1562
          %v1587 = vpack.c.b16 %v1565, %v1564
          %v1588 = vpack.c.b16 %v1567, %v1566
          %v1589 = vpack.c.b16 %v1569, %v1568
          %v1590 = vpack.c.b16 %v1571, %v1570
          %v1591 = vpack.c.b16 %v1573, %v1572
          %v1592 = vpack.c.b16 %v1575, %v1574
          %v1593 = vpack.c.b16 %v1577, %v1576
          %1610 = vmatprep.subr.bf16.mxu0 0
          %1611 = vmatpush1.bf16.msra.mxu0 %v1578
          %1612 = vmatprep.subr.bf16.mxu0 0
          %1613 = vmatpush1.bf16.msra.mxu0 %v1579
          %1614 = vmatprep.subr.bf16.mxu0 0
          %1615 = vmatpush1.bf16.msra.mxu0 %v1580
          %1616 = vmatprep.subr.bf16.mxu0 0
          %1617 = vmatpush1.bf16.msra.mxu0 %v1581
          %1618 = vmatprep.subr.bf16.mxu0 0
          %1619 = vmatpush1.bf16.msra.mxu0 %v1582
          %1620 = vmatprep.subr.bf16.mxu0 0
          %1621 = vmatpush1.bf16.msra.mxu0 %v1583
          %1622 = vmatprep.subr.bf16.mxu0 0
          %1623 = vmatpush1.bf16.msra.mxu0 %v1584
          %1624 = vmatprep.subr.bf16.mxu0 0
          %1625 = vmatpush1.bf16.msra.mxu0 %v1585
          %1626 = vmatprep.subr.bf16.mxu0 0
          %1627 = vmatpush1.bf16.msra.mxu0 %v1586
          %1628 = vmatprep.subr.bf16.mxu0 0
          %1629 = vmatpush1.bf16.msra.mxu0 %v1587
          %1630 = vmatprep.subr.bf16.mxu0 0
          %1631 = vmatpush1.bf16.msra.mxu0 %v1588
          %1632 = vmatprep.subr.bf16.mxu0 0
          %1633 = vmatpush1.bf16.msra.mxu0 %v1589
          %1634 = vmatprep.subr.bf16.mxu0 0
          %1635 = vmatpush1.bf16.msra.mxu0 %v1590
          %1636 = vmatprep.subr.bf16.mxu0 0
          %1637 = vmatpush1.bf16.msra.mxu0 %v1591
          %1638 = vmatprep.subr.bf16.mxu0 0
          %1639 = vmatpush1.bf16.msra.mxu0 %v1592
          %1640 = vmatprep.subr.bf16.mxu0 0
          %1641 = vmatpush1.bf16.msra.mxu0 %v1593
          %1642 = vmatprep.mubr.bf16.mxu0 %v1467
          %1643 = vmatmul.mubr.bf16.gmra.mrb[0].mxu0 %v1466
          %v1644 = vpop.f32.mrb[0].mxu0
          %v1645 = vadd.f32 0.0, %v1644
          %v1646 = vpop.f32.mrb[0].mxu0
          %v1647 = vpop.f32.mrb[0].mxu0
          %v1648 = vadd.f32 0.0, %v1647
          %v1649 = vpop.f32.mrb[0].mxu0
          %1650 = vmatprep.mubr.bf16.mxu0 %v1469
          %1651 = vmatmul.mubr.bf16.gmra.mrb[0].mxu0 %v1468
          %v1652 = vpop.f32.mrb[0].mxu0
          %v1653 = vadd.f32 0.0, %v1652
          %v1654 = vpop.f32.mrb[0].mxu0
          %v1655 = vpop.f32.mrb[0].mxu0
          %v1656 = vadd.f32 0.0, %v1655
          %v1657 = vpop.f32.mrb[0].mxu0
          %1658 = vmatprep.mubr.bf16.mxu0 %v1471
          %1659 = vmatmul.mubr.bf16.gmra.mrb[0].mxu0 %v1470
          %v1660 = vpop.f32.mrb[0].mxu0
          %v1661 = vadd.f32 0.0, %v1660
          %v1662 = vpop.f32.mrb[0].mxu0
          %v1663 = vpop.f32.mrb[0].mxu0
          %v1664 = vadd.f32 0.0, %v1663
          %v1665 = vpop.f32.mrb[0].mxu0
          %1666 = vmatprep.mubr.bf16.mxu0 %v1473
          %1667 = vmatmul.mubr.bf16.gmra.mrb[0].mxu0 %v1472
          %v1668 = vpop.f32.mrb[0].mxu0
          %v1669 = vadd.f32 0.0, %v1668
          %v1670 = vpop.f32.mrb[0].mxu0
          %v1671 = vpop.f32.mrb[0].mxu0
          %v1672 = vadd.f32 0.0, %v1671
          %v1673 = vpop.f32.mrb[0].mxu0
          %1674 = vmatprep.mubr.bf16.mxu0 %v1475
          %1675 = vmatmul.mubr.bf16.gmra.mrb[0].mxu0 %v1474
          %v1676 = vpop.f32.mrb[0].mxu0
          %v1677 = vadd.f32 0.0, %v1676
          %v1678 = vpop.f32.mrb[0].mxu0
          %v1679 = vpop.f32.mrb[0].mxu0
          %v1680 = vadd.f32 0.0, %v1679
          %v1681 = vpop.f32.mrb[0].mxu0
          %1682 = vmatprep.mubr.bf16.mxu0 %v1477
          %1683 = vmatmul.mubr.bf16.gmra.mrb[0].mxu0 %v1476
          %v1684 = vpop.f32.mrb[0].mxu0
          %v1685 = vadd.f32 0.0, %v1684
          %v1686 = vpop.f32.mrb[0].mxu0
          %v1687 = vpop.f32.mrb[0].mxu0
          %v1688 = vadd.f32 0.0, %v1687
          %v1689 = vpop.f32.mrb[0].mxu0
          %1690 = vmatprep.mubr.bf16.mxu0 %v1479
          %1691 = vmatmul.mubr.bf16.gmra.mrb[0].mxu0 %v1478
          %v1692 = vpop.f32.mrb[0].mxu0
          %v1693 = vadd.f32 0.0, %v1692
          %v1694 = vpop.f32.mrb[0].mxu0
          %v1695 = vpop.f32.mrb[0].mxu0
          %v1696 = vadd.f32 0.0, %v1695
          %v1697 = vpop.f32.mrb[0].mxu0
          %1698 = vmatprep.mubr.bf16.mxu0 %v1481
          %1699 = vmatmul.mubr.bf16.gmra.mrb[0].mxu0 %v1480
          %v1700 = vpop.f32.mrb[0].mxu0
          %v1701 = vadd.f32 0.0, %v1700
          %v1702 = vpop.f32.mrb[0].mxu0
          %v1703 = vpop.f32.mrb[0].mxu0
          %v1704 = vadd.f32 0.0, %v1703
          %v1705 = vpop.f32.mrb[0].mxu0
          %1706 = vdwg.mxu0
          %v1707 = vpack.c.bf16 %v1648, %v1645
          %v1708 = vpack.c.bf16 %v1656, %v1653
          %v1709 = vpack.c.bf16 %v1664, %v1661
          %v1710 = vpack.c.bf16 %v1672, %v1669
          %v1711 = vpack.c.bf16 %v1680, %v1677
          %v1712 = vpack.c.bf16 %v1688, %v1685
          %v1713 = vpack.c.bf16 %v1696, %v1693
          %v1714 = vpack.c.bf16 %v1704, %v1701
          %v1723 = vunpack.c.l.b16 %v1707
          %v1724 = vunpack.c.h.b16 %v1707
          %v1725 = vunpack.c.l.b16 %v1708
          %v1726 = vunpack.c.h.b16 %v1708
          %v1727 = vunpack.c.l.b16 %v1709
          %v1728 = vunpack.c.h.b16 %v1709
          %v1729 = vunpack.c.l.b16 %v1710
          %v1730 = vunpack.c.h.b16 %v1710
          %v1731 = vunpack.c.l.b16 %v1711
          %v1732 = vunpack.c.h.b16 %v1711
          %v1733 = vunpack.c.l.b16 %v1712
          %v1734 = vunpack.c.h.b16 %v1712
          %v1735 = vunpack.c.l.b16 %v1713
          %v1736 = vunpack.c.h.b16 %v1713
          %v1737 = vunpack.c.l.b16 %v1714
          %v1738 = vunpack.c.h.b16 %v1714
          %v1739 = vpack.c.b16 %v1723, %v1723
          %v1740 = vpack.c.b16 %v1724, %v1724
          %v1741 = vpack.c.b16 %v1725, %v1725
          %v1742 = vpack.c.b16 %v1726, %v1726
          %v1743 = vpack.c.b16 %v1727, %v1727
          %v1744 = vpack.c.b16 %v1728, %v1728
          %v1745 = vpack.c.b16 %v1729, %v1729
          %v1746 = vpack.c.b16 %v1730, %v1730
          %v1747 = vpack.c.b16 %v1731, %v1731
          %v1748 = vpack.c.b16 %v1732, %v1732
          %v1749 = vpack.c.b16 %v1733, %v1733
          %v1750 = vpack.c.b16 %v1734, %v1734
          %v1751 = vpack.c.b16 %v1735, %v1735
          %v1752 = vpack.c.b16 %v1736, %v1736
          %v1753 = vpack.c.b16 %v1737, %v1737
          %v1754 = vpack.c.b16 %v1738, %v1738
          %1771 = vst [vmem:[%s560] sm:$0xf] %v1739
          %1772 = vst [vmem:[%s560 + $0x4] sm:$0xf] %v1740
          %1773 = vst [vmem:[%s560 + $0x8] sm:$0xf] %v1741
          %1774 = vst [vmem:[%s560 + $0xc] sm:$0xf] %v1742
          %1775 = vst [vmem:[%s560 + $0x10] sm:$0xf] %v1743
          %1776 = vst [vmem:[%s560 + $0x14] sm:$0xf] %v1744
          %1777 = vst [vmem:[%s560 + $0x18] sm:$0xf] %v1745
          %1778 = vst [vmem:[%s560 + $0x1c] sm:$0xf] %v1746
          %1779 = vst [vmem:[%s560 + $0x20] sm:$0xf] %v1747
          %1780 = vst [vmem:[%s560 + $0x24] sm:$0xf] %v1748
          %1781 = vst [vmem:[%s560 + $0x28] sm:$0xf] %v1749
          %1782 = vst [vmem:[%s560 + $0x2c] sm:$0xf] %v1750
          %1783 = vst [vmem:[%s560 + $0x30] sm:$0xf] %v1751
          %1784 = vst [vmem:[%s560 + $0x34] sm:$0xf] %v1752
          %1785 = vst [vmem:[%s560 + $0x38] sm:$0xf] %v1753
          %1786 = vst [vmem:[%s560 + $0x3c] sm:$0xf] %v1754
          %v1787 = vld [vmem:[#allocation17] sm:$0xf]
          %v1788 = vld [vmem:[#allocation17 + $0x4] sm:$0xf]
          %v1789 = vld [vmem:[#allocation17 + $0x8] sm:$0xf]
          %v1790 = vld [vmem:[#allocation17 + $0xc] sm:$0xf]
          %v1791 = vld [vmem:[#allocation17 + $0x10] sm:$0xf]
          %v1792 = vld [vmem:[#allocation17 + $0x14] sm:$0xf]
          %v1793 = vld [vmem:[#allocation17 + $0x18] sm:$0xf]
          %v1794 = vld [vmem:[#allocation17 + $0x1c] sm:$0xf]
          %v1795 = vld [vmem:[#allocation17 + $0x20] sm:$0xf]
          %v1796 = vld [vmem:[#allocation17 + $0x24] sm:$0xf]
          %v1797 = vld [vmem:[#allocation17 + $0x28] sm:$0xf]
          %v1798 = vld [vmem:[#allocation17 + $0x2c] sm:$0xf]
          %v1799 = vld [vmem:[#allocation17 + $0x30] sm:$0xf]
          %v1800 = vld [vmem:[#allocation17 + $0x34] sm:$0xf]
          %v1801 = vld [vmem:[#allocation17 + $0x38] sm:$0xf]
          %v1802 = vld [vmem:[#allocation17 + $0x3c] sm:$0xf]
          %v1803 = vld [vmem:[#allocation17 + $0x40] sm:$0xf]
          %v1804 = vld [vmem:[#allocation17 + $0x44] sm:$0xf]
          %v1805 = vld [vmem:[#allocation17 + $0x48] sm:$0xf]
          %v1806 = vld [vmem:[#allocation17 + $0x4c] sm:$0xf]
          %v1807 = vld [vmem:[#allocation17 + $0x50] sm:$0xf]
          %v1808 = vld [vmem:[#allocation17 + $0x54] sm:$0xf]
          %v1809 = vld [vmem:[#allocation17 + $0x58] sm:$0xf]
          %v1810 = vld [vmem:[#allocation17 + $0x5c] sm:$0xf]
          %v1811 = vld [vmem:[#allocation17 + $0x60] sm:$0xf]
          %v1812 = vld [vmem:[#allocation17 + $0x64] sm:$0xf]
          %v1813 = vld [vmem:[#allocation17 + $0x68] sm:$0xf]
          %v1814 = vld [vmem:[#allocation17 + $0x6c] sm:$0xf]
          %v1815 = vld [vmem:[#allocation17 + $0x70] sm:$0xf]
          %v1816 = vld [vmem:[#allocation17 + $0x74] sm:$0xf]
          %v1817 = vld [vmem:[#allocation17 + $0x78] sm:$0xf]
          %v1818 = vld [vmem:[#allocation17 + $0x7c] sm:$0xf]
          %v1819 = vld [vmem:[%s10] sm:$0x1]
          %v1821 = vlaneseq
          %v1822 = vshrl.u32 %v1821, 7
          %v1823 = vsub.s32 0, %v1822
          %v1824 = vrot.slane %v1819, %v1823
          %v1858 = vunpack.c.l.b16 %v1787
          %v1859 = vunpack.c.l.b16 %v1788
          %v1860 = vunpack.c.l.b16 %v1789
          %v1861 = vunpack.c.l.b16 %v1790
          %v1862 = vunpack.c.l.b16 %v1791
          %v1863 = vunpack.c.l.b16 %v1792
          %v1864 = vunpack.c.l.b16 %v1793
          %v1865 = vunpack.c.l.b16 %v1794
          %v1866 = vunpack.c.l.b16 %v1795
          %v1867 = vunpack.c.l.b16 %v1796
          %v1868 = vunpack.c.l.b16 %v1797
          %v1869 = vunpack.c.l.b16 %v1798
          %v1870 = vunpack.c.l.b16 %v1799
          %v1871 = vunpack.c.l.b16 %v1800
          %v1872 = vunpack.c.l.b16 %v1801
          %v1873 = vunpack.c.l.b16 %v1802
          %v1874 = vunpack.c.l.b16 %v1803
          %v1875 = vunpack.c.l.b16 %v1804
          %v1876 = vunpack.c.l.b16 %v1805
          %v1877 = vunpack.c.l.b16 %v1806
          %v1878 = vunpack.c.l.b16 %v1807
          %v1879 = vunpack.c.l.b16 %v1808
          %v1880 = vunpack.c.l.b16 %v1809
          %v1881 = vunpack.c.l.b16 %v1810
          %v1882 = vunpack.c.l.b16 %v1811
          %v1883 = vunpack.c.l.b16 %v1812
          %v1884 = vunpack.c.l.b16 %v1813
          %v1885 = vunpack.c.l.b16 %v1814
          %v1886 = vunpack.c.l.b16 %v1815
          %v1887 = vunpack.c.l.b16 %v1816
          %v1888 = vunpack.c.l.b16 %v1817
          %v1889 = vunpack.c.l.b16 %v1818
          %v1890 = vpack.c.b16 %v1859, %v1858
          %v1891 = vpack.c.b16 %v1861, %v1860
          %v1892 = vpack.c.b16 %v1863, %v1862
          %v1893 = vpack.c.b16 %v1865, %v1864
          %v1894 = vpack.c.b16 %v1867, %v1866
          %v1895 = vpack.c.b16 %v1869, %v1868
          %v1896 = vpack.c.b16 %v1871, %v1870
          %v1897 = vpack.c.b16 %v1873, %v1872
          %v1898 = vpack.c.b16 %v1875, %v1874
          %v1899 = vpack.c.b16 %v1877, %v1876
          %v1900 = vpack.c.b16 %v1879, %v1878
          %v1901 = vpack.c.b16 %v1881, %v1880
          %v1902 = vpack.c.b16 %v1883, %v1882
          %v1903 = vpack.c.b16 %v1885, %v1884
          %v1904 = vpack.c.b16 %v1887, %v1886
          %v1905 = vpack.c.b16 %v1889, %v1888
          %1922 = vmatprep.subr.bf16.mxu0 0
          %1923 = vmatpush1.bf16.msra.mxu0 %v1890
          %1924 = vmatprep.subr.bf16.mxu0 0
          %1925 = vmatpush1.bf16.msra.mxu0 %v1891
          %1926 = vmatprep.subr.bf16.mxu0 0
          %1927 = vmatpush1.bf16.msra.mxu0 %v1892
          %1928 = vmatprep.subr.bf16.mxu0 0
          %1929 = vmatpush1.bf16.msra.mxu0 %v1893
          %1930 = vmatprep.subr.bf16.mxu0 0
          %1931 = vmatpush1.bf16.msra.mxu0 %v1894
          %1932 = vmatprep.subr.bf16.mxu0 0
          %1933 = vmatpush1.bf16.msra.mxu0 %v1895
          %1934 = vmatprep.subr.bf16.mxu0 0
          %1935 = vmatpush1.bf16.msra.mxu0 %v1896
          %1936 = vmatprep.subr.bf16.mxu0 0
          %1937 = vmatpush1.bf16.msra.mxu0 %v1897
          %1938 = vmatprep.subr.bf16.mxu0 0
          %1939 = vmatpush1.bf16.msra.mxu0 %v1898
          %1940 = vmatprep.subr.bf16.mxu0 0
          %1941 = vmatpush1.bf16.msra.mxu0 %v1899
          %1942 = vmatprep.subr.bf16.mxu0 0
          %1943 = vmatpush1.bf16.msra.mxu0 %v1900
          %1944 = vmatprep.subr.bf16.mxu0 0
          %1945 = vmatpush1.bf16.msra.mxu0 %v1901
          %1946 = vmatprep.subr.bf16.mxu0 0
          %1947 = vmatpush1.bf16.msra.mxu0 %v1902
          %1948 = vmatprep.subr.bf16.mxu0 0
          %1949 = vmatpush1.bf16.msra.mxu0 %v1903
          %1950 = vmatprep.subr.bf16.mxu0 0
          %1951 = vmatpush1.bf16.msra.mxu0 %v1904
          %1952 = vmatprep.subr.bf16.mxu0 0
          %1953 = vmatpush1.bf16.msra.mxu0 %v1905
          %1954 = vmatprep.mubr.bf16.mxu0 %v1467
          %1955 = vmatmul.mubr.bf16.gmra.mrb[0].mxu0 %v1466
          %v1956 = vpop.f32.mrb[0].mxu0
          %v1957 = vadd.f32 %v1824, %v1956
          %v1958 = vpop.f32.mrb[0].mxu0
          %v1959 = vpop.f32.mrb[0].mxu0
          %v1960 = vadd.f32 %v1824, %v1959
          %v1961 = vpop.f32.mrb[0].mxu0
          %1962 = vmatprep.mubr.bf16.mxu0 %v1469
          %1963 = vmatmul.mubr.bf16.gmra.mrb[0].mxu0 %v1468
          %v1964 = vpop.f32.mrb[0].mxu0
          %v1965 = vadd.f32 %v1824, %v1964
          %v1966 = vpop.f32.mrb[0].mxu0
          %v1967 = vpop.f32.mrb[0].mxu0
          %v1968 = vadd.f32 %v1824, %v1967
          %v1969 = vpop.f32.mrb[0].mxu0
          %1970 = vmatprep.mubr.bf16.mxu0 %v1471
          %1971 = vmatmul.mubr.bf16.gmra.mrb[0].mxu0 %v1470
          %v1972 = vpop.f32.mrb[0].mxu0
          %v1973 = vadd.f32 %v1824, %v1972
          %v1974 = vpop.f32.mrb[0].mxu0
          %v1975 = vpop.f32.mrb[0].mxu0
          %v1976 = vadd.f32 %v1824, %v1975
          %v1977 = vpop.f32.mrb[0].mxu0
          %1978 = vmatprep.mubr.bf16.mxu0 %v1473
          %1979 = vmatmul.mubr.bf16.gmra.mrb[0].mxu0 %v1472
          %v1980 = vpop.f32.mrb[0].mxu0
          %v1981 = vadd.f32 %v1824, %v1980
          %v1982 = vpop.f32.mrb[0].mxu0
          %v1983 = vpop.f32.mrb[0].mxu0
          %v1984 = vadd.f32 %v1824, %v1983
          %v1985 = vpop.f32.mrb[0].mxu0
          %1986 = vmatprep.mubr.bf16.mxu0 %v1475
          %1987 = vmatmul.mubr.bf16.gmra.mrb[0].mxu0 %v1474
          %v1988 = vpop.f32.mrb[0].mxu0
          %v1989 = vadd.f32 %v1824, %v1988
          %v1990 = vpop.f32.mrb[0].mxu0
          %v1991 = vpop.f32.mrb[0].mxu0
          %v1992 = vadd.f32 %v1824, %v1991
          %v1993 = vpop.f32.mrb[0].mxu0
          %1994 = vmatprep.mubr.bf16.mxu0 %v1477
          %1995 = vmatmul.mubr.bf16.gmra.mrb[0].mxu0 %v1476
          %v1996 = vpop.f32.mrb[0].mxu0
          %v1997 = vadd.f32 %v1824, %v1996
          %v1998 = vpop.f32.mrb[0].mxu0
          %v1999 = vpop.f32.mrb[0].mxu0
          %v2000 = vadd.f32 %v1824, %v1999
          %v2001 = vpop.f32.mrb[0].mxu0
          %2002 = vmatprep.mubr.bf16.mxu0 %v1479
          %2003 = vmatmul.mubr.bf16.gmra.mrb[0].mxu0 %v1478
          %v2004 = vpop.f32.mrb[0].mxu0
          %v2005 = vadd.f32 %v1824, %v2004
          %v2006 = vpop.f32.mrb[0].mxu0
          %v2007 = vpop.f32.mrb[0].mxu0
          %v2008 = vadd.f32 %v1824, %v2007
          %v2009 = vpop.f32.mrb[0].mxu0
          %2010 = vmatprep.mubr.bf16.mxu0 %v1481
          %2011 = vmatmul.mubr.bf16.gmra.mrb[0].mxu0 %v1480
          %v2012 = vpop.f32.mrb[0].mxu0
          %v2013 = vadd.f32 %v1824, %v2012
          %v2014 = vpop.f32.mrb[0].mxu0
          %v2015 = vpop.f32.mrb[0].mxu0
          %v2016 = vadd.f32 %v1824, %v2015
          %v2017 = vpop.f32.mrb[0].mxu0
          %2018 = vdwg.mxu0
          %2019 = vst [vmem:[%s567] sm:$0xff] %v1957
          %2020 = vst [vmem:[%s567 + $0x8] sm:$0xff] %v1960
          %2021 = vst [vmem:[%s567 + $0x10] sm:$0xff] %v1965
          %2022 = vst [vmem:[%s567 + $0x18] sm:$0xff] %v1968
          %2023 = vst [vmem:[%s567 + $0x20] sm:$0xff] %v1973
          %2024 = vst [vmem:[%s567 + $0x28] sm:$0xff] %v1976
          %2025 = vst [vmem:[%s567 + $0x30] sm:$0xff] %v1981
          %2026 = vst [vmem:[%s567 + $0x38] sm:$0xff] %v1984
          %2027 = vst [vmem:[%s567 + $0x40] sm:$0xff] %v1989
          %2028 = vst [vmem:[%s567 + $0x48] sm:$0xff] %v1992
          %2029 = vst [vmem:[%s567 + $0x50] sm:$0xff] %v1997
          %2030 = vst [vmem:[%s567 + $0x58] sm:$0xff] %v2000
          %2031 = vst [vmem:[%s567 + $0x60] sm:$0xff] %v2005
          %2032 = vst [vmem:[%s567 + $0x68] sm:$0xff] %v2008
          %2033 = vst [vmem:[%s567 + $0x70] sm:$0xff] %v2013
          %2034 = vst [vmem:[%s567 + $0x78] sm:$0xff] %v2016
        $region96: #{tpu_custom_call.1} parent=55 // pred_fallthru
          _
        %s2035 = sand.u32 %s284, 1
        %s2036 = scalar_lea.sflag [#allocation8], %s2035
        %s2037 = sand.u32 %s284, 1
        %s2038 = smul.addr %s2037, 64
        %s2039 = scalar_lea.vmem [#allocation18], %s2038
        %s2040 = sand.u32 %s310, 1
        %s2041 = scalar_lea.sflag [#allocation20], %s2040
        %s2042 = sand.u32 %s310, 1
        %s2043 = smul.addr %s2042, 128
        %s2044 = scalar_lea.vmem [#allocation19], %s2043
        // Predicated region
        $region97: #{tpu_custom_call.1} parent=55 // pred_check
          %p2045 = pneg %p294
        $region98: #{tpu_custom_call.1} parent=55 // pred_check_branch
          %2047 = sbr.rel (%p2045) target = $region100
        $region99: #{tpu_custom_call.1} parent=55 // pred_region
          %s2048 = smul.u32 16, %s50
          %s2050 = ssub.s32 1024, 1024
          %2051 = vsyncadd %s2036, %s2050
          %s2052 = smul.addr %s2048, 64
          %s2053 = scalar_lea.hbm %s11, %s2052
          %s2054 = sshll.u32 %s2039, 4
          %s2055 = int_to_ptr.vmem [resolvable:$true] %s2054
          %2060 = dma.vmem_to_hbm [thread:$0]  %s2055, 1024, %s2053, %s2036, 64, 64, 4
        $region100: #{tpu_custom_call.1} parent=55 // pred_fallthru
          _
        // Predicated region
        $region101: #{tpu_custom_call.1} parent=55 // pred_check
          %p2061 = pneg %p320
        $region102: #{tpu_custom_call.1} parent=55 // pred_check_branch
          %2063 = sbr.rel (%p2061) target = $region104
        $region103: #{tpu_custom_call.1} parent=55 // pred_region
          %s2064 = smul.u32 16, %s50
          %s2066 = ssub.s32 2048, 2048
          %2067 = vsyncadd %s2041, %s2066
          %s2068 = smul.addr %s2064, 128
          %s2069 = scalar_lea.hbm %s12, %s2068
          %s2070 = sshll.u32 %s2044, 4
          %s2071 = int_to_ptr.vmem [resolvable:$true] %s2070
          %2076 = dma.vmem_to_hbm [thread:$0]  %s2071, 2048, %s2069, %s2041, 128, 128, 8
        $region104: #{tpu_custom_call.1} parent=55 // pred_fallthru
          _
      $region56: #{tpu_custom_call.1} parent=5 // pred_fallthru
        _
      %p2077 = scmp.le.s32.totalorder 2, %s41
      // Predicated region
      $region105: #{tpu_custom_call.1} parent=5 // pred_check
        %p2078 = pneg %p2077
      $region106: #{tpu_custom_call.1} parent=5 // pred_check_branch
        %2080 = sbr.rel (%p2078) target = $region108
      $region107: #{tpu_custom_call.1} parent=5 // pred_region
        %s2081 = ssub.s32 %s41, 2
        // Predicated region
        $region109: #{tpu_custom_call.1} parent=107 // pred_check
          %p2082 = pneg %p300
        $region110: #{tpu_custom_call.1} parent=107 // pred_check_branch
          %2084 = sbr.rel (%p2082) target = $region112
        $region111: #{tpu_custom_call.1} parent=107 // pred_region
          %s2085 = sand.u32 %s285, 1
          %s2086 = scalar_lea.sflag [#allocation8], %s2085
          %s2087 = sand.u32 %s285, 1
          %s2088 = smul.addr %s2087, 64
          %s2089 = scalar_lea.vmem [#allocation18], %s2088
          %2090 = dma.done %s2086, 1024
        $region112: #{tpu_custom_call.1} parent=107 // pred_fallthru
          _
        // Predicated region
        $region113: #{tpu_custom_call.1} parent=107 // pred_check
          %p2091 = pneg %p326
        $region114: #{tpu_custom_call.1} parent=107 // pred_check_branch
          %2093 = sbr.rel (%p2091) target = $region116
        $region115: #{tpu_custom_call.1} parent=107 // pred_region
          %s2094 = sand.u32 %s311, 1
          %s2095 = scalar_lea.sflag [#allocation20], %s2094
          %s2096 = sand.u32 %s311, 1
          %s2097 = smul.addr %s2096, 128
          %s2098 = scalar_lea.vmem [#allocation19], %s2097
          %2099 = dma.done %s2095, 2048
        $region116: #{tpu_custom_call.1} parent=107 // pred_fallthru
          _
      $region108: #{tpu_custom_call.1} parent=5 // pred_fallthru
        _
    $region6: #{tpu_custom_call.1} parent=1 // loop_footer
      %s45 = sadd.s32 1, %s41
    $region7: #{tpu_custom_call.1} parent=1 // loop_footer_branch
      %40 = sbr.rel target = $region3
    $region8: #{tpu_custom_call.1} parent=1 // loop_exit
      _
    %2100 = vsyncpa [#allocation7], 1
    %s2101 = scalar_lea.sflag [#allocation7], 1
    %2102 = vsyncpa %s2101, 1
    %2103 = vsyncpa [#allocation10], 1
    %s2104 = scalar_lea.sflag [#allocation10], 1
    %2105 = vsyncpa %s2104, 1
    %2106 = vsyncpa [#allocation13], 1
    %2107 = vsyncpa [#allocation16], 1
    %2108 = vsyncpa [#allocation8], 1
    %s2109 = scalar_lea.sflag [#allocation8], 1
    %2110 = vsyncpa %s2109, 1
    %2111 = vsyncpa [#allocation20], 1
    %s2112 = scalar_lea.sflag [#allocation20], 1
    %2113 = vsyncpa %s2112, 1

</llo_original>
